<compile_context>
chip_gen: v6e
topology: v6e:2x2x1
jax: 0.10.0
libtpu: 0.0.40
codegen_flags: <defaults>
</compile_context>

<pallas_src>
import numpy as np
import jax
import jax.numpy as jnp
from jax import lax
from jax.experimental import pallas as pl
from jax.experimental.pallas import tpu as pltpu


# ----------------------------------------------------------------------------
# Pallas kernel factory: full BetaVAE1D forward for one tile of TB samples
# ----------------------------------------------------------------------------
def _make_kernel(tb, cl, lat):
    r1 = tb * cl                       # rows per length-position block
    f32, bf16 = jnp.float32, jnp.bfloat16

    def kernel(xin_ref, w1, b1, w2, b2, w3, b3, wml, bml,
               wd, bdr, u1w, u1b, u2w, u2b, u3w, u3b,
               recon_ref, mulv_ref):

        def mm(a, w_ref):              # bf16 MXU matmul, f32 accumulate
            return jnp.dot(a.astype(bf16), w_ref[...], preferred_element_type=f32)

        # Per-batch-element shifts along the position axis (t-major rows:
        # row = t*tb + b).  roll is an XLU sublane rotate (shift multiple of
        # 8); the where-mask zeroes the wrapped rows so adjacent batch
        # elements never bleed into each other.
        row = lax.broadcasted_iota(jnp.int32, (r1, 1), 0)
        keep_dn = row >= tb            # t == 0 rows become zero after down-shift
        keep_up = row < (r1 - tb)      # t == cl-1 rows become zero after up-shift

        def shift_down(a):             # out[t] = a[t-1]
            return jnp.where(keep_dn, pltpu.roll(a, shift=tb, axis=0), 0.0)

        def shift_up(a):               # out[t] = a[t+1]
            return jnp.where(keep_up, pltpu.roll(a, shift=r1 - tb, axis=0), 0.0)

        xin = xin_ref[0]                                   # (4*r1 + tb, w_in) f32
        a1in = xin[0:4 * r1, :]                            # conv1 taps (phase-major)
        eps = xin[4 * r1:4 * r1 + tb, 0:lat]               # reparam noise

        # ---------------- encoder: one fused MXU matmul per conv layer ----------
        a1 = jnp.maximum(mm(a1in, w1) + b1[...], 0.0)      # (4*r1, 32)
        a1_0, a1_1 = a1[0:r1, :], a1[r1:2 * r1, :]
        a1_2, a1_3 = a1[2 * r1:3 * r1, :], a1[3 * r1:4 * r1, :]

        a2in = jnp.concatenate(
            [jnp.concatenate([shift_down(a1_3), a1_0, a1_1], axis=1),   # even outputs
             jnp.concatenate([a1_1, a1_2, a1_3], axis=1)], axis=0)      # odd outputs
        a2 = jnp.maximum(mm(a2in, w2) + b2[...], 0.0)      # (2*r1, 64)
        a2_0, a2_1 = a2[0:r1, :], a2[r1:2 * r1, :]

        a3in = jnp.concatenate([shift_down(a2_1), a2_0, a2_1], axis=1)  # (r1, 192)
        a3 = jnp.maximum(mm(a3in, w3) + b3[...], 0.0)      # (r1, 128)

        # -------- fused fc_mean|fc_logvar: accumulate over the cl positions ------
        mulv = jnp.zeros((tb, 2 * lat), f32)
        for t in range(cl):
            mulv = mulv + jnp.dot(a3[t * tb:(t + 1) * tb, :].astype(bf16), wml[t],
                                  preferred_element_type=f32)
        mulv = mulv + bml[...]
        mulv_ref[0] = mulv                                 # mu|logvar in one block

        # ---------------- reparameterize (f32 VPU/EUP math) ----------------------
        mu = mulv[:, 0:lat]
        lv = mulv[:, lat:2 * lat]
        z = mu + eps * jnp.exp(0.5 * lv)                   # (tb, lat)

        # -------- decoder_input: per-position (tb,128) row blocks, no reshuffle ---
        zb = z.astype(bf16)
        d0 = jnp.concatenate(
            [jnp.dot(zb, wd[t], preferred_element_type=f32) for t in range(cl)],
            axis=0)                                        # (r1, 128)
        d0 = jnp.maximum(d0 + bdr[...], 0.0)

        # -------- transposed convs: output phases packed on lanes ----------------
        y1in = jnp.concatenate([d0, shift_up(d0)], axis=1)             # (r1, 256)
        y1 = jnp.maximum(mm(y1in, u1w) + u1b[...], 0.0)                # (r1, 2*64)

        y2in = jnp.concatenate([y1, shift_up(y1[:, 0:64])], axis=1)    # (r1, 192)
        y2 = jnp.maximum(mm(y2in, u2w) + u2b[...], 0.0)                # (r1, 4*32)

        y3in = jnp.concatenate([y2, shift_up(y2[:, 0:32])], axis=1)    # (r1, 160)
        y3 = mm(y3in, u3w) + u3b[...]                                  # (r1, 8)

        recon_ref[0] = y3

    return kernel


# ----------------------------------------------------------------------------
# One-time weight re-layout (runs outside jit; pure glue)
# ----------------------------------------------------------------------------
def prepare_params(params, input_length, latent_dim, tb):
    f32, bf16 = jnp.float32, jnp.bfloat16
    cl = input_length // 8
    lat = latent_dim
    w_in = max(3, lat)

    def enc_w(w):  # torch (Cout, Cin, 3) -> (3*Cin, Cout), rows k*Cin + cin
        return jnp.transpose(w, (2, 1, 0)).reshape(3 * w.shape[1], w.shape[0])

    w1 = jnp.pad(enc_w(params["conv1_w"]), ((0, w_in - 3), (0, 0))).astype(bf16)
    b1 = params["conv1_b"][None, :].astype(f32)
    w2 = enc_w(params["conv2_w"]).astype(bf16)             # (96, 64)
    b2 = params["conv2_b"][None, :].astype(f32)
    w3 = enc_w(params["conv3_w"]).astype(bf16)             # (192, 128)
    b3 = params["conv3_b"][None, :].astype(f32)

    # fused fc_mean|fc_logvar: wml[t, c, :] = [W_mean[n, c*cl+t] | W_logvar[...]]
    wm = jnp.transpose(params["fc_mean_w"].reshape(lat, 128, cl), (2, 1, 0))
    wl = jnp.transpose(params["fc_logvar_w"].reshape(lat, 128, cl), (2, 1, 0))
    wml = jnp.concatenate([wm, wl], axis=2).astype(bf16)   # (cl, 128, 2*lat)
    bml = jnp.concatenate([params["fc_mean_b"],
                           params["fc_logvar_b"]])[None, :].astype(f32)

    # decoder_input: wd[t, n, c] = dec_in_w[c*cl + t, n]; bias replicated per row
    wd = jnp.transpose(params["dec_in_w"].reshape(128, cl, lat), (1, 2, 0)).astype(bf16)
    bd = jnp.transpose(params["dec_in_b"].reshape(128, cl), (1, 0))      # (cl, 128)
    bd_rep = jnp.repeat(bd, tb, axis=0).astype(f32)                      # (cl*tb, 128)

    # deconv1: output phases (even|odd) packed on lanes
    g = jnp.transpose(params["deconv1_w"], (2, 0, 1))      # (3, 128, 64)
    zg = jnp.zeros((128, 64), f32)
    u1w = jnp.concatenate([jnp.concatenate([g[1], g[2]], axis=1),
                           jnp.concatenate([zg, g[0]], axis=1)], axis=0).astype(bf16)
    u1b = jnp.tile(params["deconv1_b"], 2)[None, :].astype(f32)

    # deconv2: output phases mod 4 packed on lanes
    fdw = jnp.transpose(params["deconv2_w"], (2, 0, 1))    # (3, 64, 32)
    zf = jnp.zeros((64, 32), f32)
    u2w = jnp.concatenate([
        jnp.concatenate([fdw[1], fdw[2], zf, zf], axis=1),       # y1_even[t]
        jnp.concatenate([zf, fdw[0], fdw[1], fdw[2]], axis=1),   # y1_odd[t]
        jnp.concatenate([zf, zf, zf, fdw[0]], axis=1)], axis=0).astype(bf16)
    u2b = jnp.tile(params["deconv2_b"], 4)[None, :].astype(f32)

    # deconv3: output phases mod 8 packed on lanes (no ReLU afterwards)
    h = jnp.transpose(params["deconv3_w"], (2, 0, 1))      # (3, 32, 1)
    zh = jnp.zeros((32, 1), f32)
    rows = [
        [h[1], h[2], zh, zh, zh, zh, zh, zh],                    # y2_p0[t]
        [zh, h[0], h[1], h[2], zh, zh, zh, zh],                  # y2_p1[t]
        [zh, zh, zh, h[0], h[1], h[2], zh, zh],                  # y2_p2[t]
        [zh, zh, zh, zh, zh, h[0], h[1], h[2]],                  # y2_p3[t]
        [zh, zh, zh, zh, zh, zh, zh, h[0]],                      # y2_p0[t+1]
    ]
    u3w = jnp.concatenate([jnp.concatenate(r, axis=1) for r in rows],
                          axis=0).astype(bf16)                   # (160, 8)
    u3b = jnp.tile(params["deconv3_b"], 8)[None, :].astype(f32)

    return (w1, b1, w2, b2, w3, b3, wml, bml, wd, bd_rep,
            u1w, u1b, u2w, u2b, u3w, u3b)


def pick_batch_tile(batch):
    # Multiple of 8 sublanes (aligned shifts/masks) while targeting >=2
    # parallel grid steps so both v7x TensorCores get work.
    tb = ((max(1, (batch + 1) // 2) + 7) // 8) * 8
    return int(max(8, min(tb, 128)))


# ----------------------------------------------------------------------------
# Forward wrapper: input packing (glue on HBM) + pallas_call + de-interleave
# ----------------------------------------------------------------------------
def betavae_forward(x_ncl, eps, prep, *, latent_dim, tb):
    f32 = jnp.float32
    B, C, L = x_ncl.shape
    assert C == 1 and L % 8 == 0
    cl = L // 8
    lat = latent_dim
    w_in = max(3, lat)
    r1 = tb * cl
    G = -(-B // tb)
    Bp = G * tb

    # conv1 tap gather (pure gather of x) + eps, packed into one per-tile block.
    xb = jnp.pad(x_ncl[:, 0, :].astype(f32), ((0, Bp - B), (0, 0)))   # (Bp, L)
    xp = jnp.pad(xb, ((0, 0), (1, 0)))                                # (Bp, L+1)
    m = np.arange(4 * cl)
    idx = (8 * (m % cl) + 2 * (m // cl))[:, None] + np.arange(3)[None, :]
    taps = xp[:, idx]                                                 # (Bp, 4*cl, 3)
    taps = taps.reshape(G, tb, 4, cl, 3).transpose(0, 2, 3, 1, 4).reshape(G, 4 * r1, 3)
    taps = jnp.pad(taps, ((0, 0), (0, 0), (0, w_in - 3)))
    ep = jnp.pad(eps.astype(f32), ((0, Bp - B), (0, w_in - lat))).reshape(G, tb, w_in)
    xin = jnp.concatenate([taps, ep], axis=1)                         # (G, 4*r1+tb, w_in)

    def full_spec(a):
        nd = a.ndim
        return pl.BlockSpec(a.shape, lambda g: (0,) * nd)

    in_specs = ([pl.BlockSpec((1, 4 * r1 + tb, w_in), lambda g: (g, 0, 0))]
                + [full_spec(w) for w in prep])
    out_specs = (pl.BlockSpec((1, r1, 8), lambda g: (g, 0, 0)),
                 pl.BlockSpec((1, tb, 2 * lat), lambda g: (g, 0, 0)))

    recon_ph, mulv = pl.pallas_call(
        _make_kernel(tb, cl, lat),
        out_shape=(jax.ShapeDtypeStruct((G, r1, 8), f32),
                   jax.ShapeDtypeStruct((G, tb, 2 * lat), f32)),
        grid=(G,),
        in_specs=in_specs,
        out_specs=out_specs,
        compiler_params=pltpu.CompilerParams(dimension_semantics=("parallel",)),
    )(xin, *prep)

    # phase de-interleave (row t*tb+b, lane s -> position 8t+s), on HBM.
    recon = recon_ph.reshape(G, cl, tb, 8).transpose(0, 2, 1, 3).reshape(Bp, L)[:B]
    mulv = mulv.reshape(Bp, 2 * lat)[:B]
    return recon.reshape(B, 1, L), mulv[:, :lat], mulv[:, lat:]


# ----------------------------------------------------------------------------
# Deterministic synthetic parameters (shapes from BetaVAE1D.__init__)
# ----------------------------------------------------------------------------
def init_params(key, input_length, latent_dim):
    cl = input_length // 8
    ks = jax.random.split(key, 18)

    def w(k, shape, fan_in):
        return (jax.random.normal(k, shape, jnp.float32) / np.sqrt(fan_in)).astype(jnp.float32)

    return {
        "conv1_w": w(ks[0], (32, 1, 3), 3),        "conv1_b": w(ks[1], (32,), 3),
        "conv2_w": w(ks[2], (64, 32, 3), 96),      "conv2_b": w(ks[3], (64,), 96),
        "conv3_w": w(ks[4], (128, 64, 3), 192),    "conv3_b": w(ks[5], (128,), 192),
        "fc_mean_w": w(ks[6], (latent_dim, 128 * cl), 128 * cl),
        "fc_mean_b": w(ks[7], (latent_dim,), 128 * cl),
        "fc_logvar_w": w(ks[8], (latent_dim, 128 * cl), 128 * cl),
        "fc_logvar_b": w(ks[9], (latent_dim,), 128 * cl),
        "dec_in_w": w(ks[10], (128 * cl, latent_dim), latent_dim),
        "dec_in_b": w(ks[11], (128 * cl,), latent_dim),
        "deconv1_w": w(ks[12], (128, 64, 3), 384), "deconv1_b": w(ks[13], (64,), 384),
        "deconv2_w": w(ks[14], (64, 32, 3), 192),  "deconv2_b": w(ks[15], (32,), 192),
        "deconv3_w": w(ks[16], (32, 1, 3), 96),    "deconv3_b": w(ks[17], (1,), 96),
    }


# ----------------------------------------------------------------------------
# Pure-JAX reference (same math as the PyTorch module), precision-matched to
# the kernel: bf16 matmul operands, f32 accumulation, f32 bias/ReLU/exp.
# ----------------------------------------------------------------------------
def reference_forward(x_ncl, eps, p):
    dn = ("NCH", "OIH", "NCH")
    bf16, f32 = jnp.bfloat16, jnp.float32

    def conv(x, w, b):
        y = lax.conv_general_dilated(x.astype(bf16), w.astype(bf16), (2,), [(1, 1)],
                                     dimension_numbers=dn, preferred_element_type=f32)
        return jax.nn.relu(y + b[None, :, None])

    def deconv(x, w, b, relu):
        wf = jnp.flip(jnp.transpose(w, (1, 0, 2)), axis=2)
        y = lax.conv_general_dilated(x.astype(bf16), wf.astype(bf16), (1,), [(1, 2)],
                                     lhs_dilation=(2,), dimension_numbers=dn,
                                     preferred_element_type=f32)
        y = y + b[None, :, None]
        return jax.nn.relu(y) if relu else y

    def lin(x, w, b):
        return jnp.dot(x.astype(bf16), w.T.astype(bf16), preferred_element_type=f32) + b

    B = x_ncl.shape[0]
    h = conv(x_ncl, p["conv1_w"], p["conv1_b"])
    h = conv(h, p["conv2_w"], p["conv2_b"])
    h = conv(h, p["conv3_w"], p["conv3_b"])
    hf = h.reshape(B, -1)
    mu = lin(hf, p["fc_mean_w"], p["fc_mean_b"])
    logvar = lin(hf, p["fc_logvar_w"], p["fc_logvar_b"])
    z = mu + eps * jnp.exp(0.5 * logvar)
    hd = jax.nn.relu(lin(z, p["dec_in_w"], p["dec_in_b"])).reshape(B, 128, -1)
    hd = deconv(hd, p["deconv1_w"], p["deconv1_b"], True)
    hd = deconv(hd, p["deconv2_w"], p["deconv2_b"], True)
    recon = deconv(hd, p["deconv3_w"], p["deconv3_b"], False)
    return recon, mu, logvar


if __name__ == "__main__":
    def run_case(batch, length, latent):
        key = jax.random.PRNGKey(0)
        kx, keps, kp = jax.random.split(key, 3)
        x = jax.random.normal(kx, (batch, 1, length), jnp.float32)
        eps = jax.random.normal(keps, (batch, latent), jnp.float32)
        params = init_params(kp, length, latent)

        tb = pick_batch_tile(batch)
        prep = prepare_params(params, length, latent, tb)   # one-time, outside jit
        fwd = jax.jit(lambda xx, ee, pp: betavae_forward(xx, ee, pp,
                                                         latent_dim=latent, tb=tb))
        recon, mu, logvar = fwd(x, eps, prep)
        jax.block_until_ready((recon, mu, logvar))

        r_recon, r_mu, r_lv = reference_forward(x, eps, params)
        # The reference uses the same bf16-operand / f32-accumulate precision as
        # the kernel, so these bounds sit ~10x above the expected numerical noise
        # (f32 summation-order + occasional bf16 rounding flips of z) while any
        # phase-packing / layout bug would show up as O(1) errors.
        np.testing.assert_allclose(np.asarray(mu), np.asarray(r_mu), rtol=2e-3, atol=2e-3)
        np.testing.assert_allclose(np.asarray(logvar), np.asarray(r_lv), rtol=2e-3, atol=2e-3)
        np.testing.assert_allclose(np.asarray(recon), np.asarray(r_recon), rtol=1e-2, atol=1e-2)

    run_case(2, 16, 10)     # original small shape (cl=2), single grid step
    run_case(16, 64, 10)    # larger L (cl=8) + 2 parallel grid steps (layout check)

    # TODO(synk): torch.randn_like RNG inside reparameterize cannot be reproduced
    # bit-exactly; the Gaussian noise `eps` is drawn with jax.random and passed in.
    print("KERNEL_OK")
</pallas_src>

<mosaic_0001>
module attributes {stable_mosaic.version = 11 : i64} {
  func.func @kernel(%arg0: i32, %arg1: memref<1x72x10xf32, #tpu.memory_space<vmem>>, %arg2: memref<10x32xbf16, #tpu.memory_space<vmem>>, %arg3: memref<1x32xf32, #tpu.memory_space<vmem>>, %arg4: memref<96x64xbf16, #tpu.memory_space<vmem>>, %arg5: memref<1x64xf32, #tpu.memory_space<vmem>>, %arg6: memref<192x128xbf16, #tpu.memory_space<vmem>>, %arg7: memref<1x128xf32, #tpu.memory_space<vmem>>, %arg8: memref<2x128x20xbf16, #tpu.memory_space<vmem>>, %arg9: memref<1x20xf32, #tpu.memory_space<vmem>>, %arg10: memref<2x10x128xbf16, #tpu.memory_space<vmem>>, %arg11: memref<16x128xf32, #tpu.memory_space<vmem>>, %arg12: memref<256x128xbf16, #tpu.memory_space<vmem>>, %arg13: memref<1x128xf32, #tpu.memory_space<vmem>>, %arg14: memref<192x128xbf16, #tpu.memory_space<vmem>>, %arg15: memref<1x128xf32, #tpu.memory_space<vmem>>, %arg16: memref<160x8xbf16, #tpu.memory_space<vmem>>, %arg17: memref<1x8xf32, #tpu.memory_space<vmem>>, %arg18: memref<1x16x8xf32, #tpu.memory_space<vmem>>, %arg19: memref<1x8x20xf32, #tpu.memory_space<vmem>>) attributes {dimension_semantics = [#tpu.dimension_semantics<parallel>], iteration_bounds = array<i64: 1>, scalar_prefetch = 0 : i64, scratch_operands = 0 : i64, tpu.core_type = #tpu.core_type<tc>, window_params = [{transform_indices = @transform_0, window_bounds = array<i64: 1, 72, 10>}, {pipeline_mode = #tpu.pipeline_mode<synchronous>, transform_indices = @transform_1, window_bounds = array<i64: 10, 32>}, {pipeline_mode = #tpu.pipeline_mode<synchronous>, transform_indices = @transform_2, window_bounds = array<i64: 1, 32>}, {pipeline_mode = #tpu.pipeline_mode<synchronous>, transform_indices = @transform_3, window_bounds = array<i64: 96, 64>}, {pipeline_mode = #tpu.pipeline_mode<synchronous>, transform_indices = @transform_4, window_bounds = array<i64: 1, 64>}, {pipeline_mode = #tpu.pipeline_mode<synchronous>, transform_indices = @transform_5, window_bounds = array<i64: 192, 128>}, {pipeline_mode = #tpu.pipeline_mode<synchronous>, transform_indices = @transform_6, window_bounds = array<i64: 1, 128>}, {pipeline_mode = #tpu.pipeline_mode<synchronous>, transform_indices = @transform_7, window_bounds = array<i64: 2, 128, 20>}, {pipeline_mode = #tpu.pipeline_mode<synchronous>, transform_indices = @transform_8, window_bounds = array<i64: 1, 20>}, {pipeline_mode = #tpu.pipeline_mode<synchronous>, transform_indices = @transform_9, window_bounds = array<i64: 2, 10, 128>}, {pipeline_mode = #tpu.pipeline_mode<synchronous>, transform_indices = @transform_10, window_bounds = array<i64: 16, 128>}, {pipeline_mode = #tpu.pipeline_mode<synchronous>, transform_indices = @transform_11, window_bounds = array<i64: 256, 128>}, {pipeline_mode = #tpu.pipeline_mode<synchronous>, transform_indices = @transform_12, window_bounds = array<i64: 1, 128>}, {pipeline_mode = #tpu.pipeline_mode<synchronous>, transform_indices = @transform_13, window_bounds = array<i64: 192, 128>}, {pipeline_mode = #tpu.pipeline_mode<synchronous>, transform_indices = @transform_14, window_bounds = array<i64: 1, 128>}, {pipeline_mode = #tpu.pipeline_mode<synchronous>, transform_indices = @transform_15, window_bounds = array<i64: 160, 8>}, {pipeline_mode = #tpu.pipeline_mode<synchronous>, transform_indices = @transform_16, window_bounds = array<i64: 1, 8>}, {transform_indices = @transform_17, window_bounds = array<i64: 1, 16, 8>}, {transform_indices = @transform_18, window_bounds = array<i64: 1, 8, 20>}]} {
    %0 = tpu.iota {dimensions = array<i32: 0>} : vector<16x1xi32>
    %c8_i32 = arith.constant 8 : i32
    %1 = vector.broadcast %c8_i32 : i32 to vector<16x1xi32>
    %2 = arith.cmpi sge, %0, %1 : vector<16x1xi32>
    %c8_i32_0 = arith.constant 8 : i32
    %3 = vector.broadcast %c8_i32_0 : i32 to vector<16x1xi32>
    %4 = arith.cmpi slt, %0, %3 : vector<16x1xi32>
    %c0 = arith.constant 0 : index
    %c0_1 = arith.constant 0 : index
    %c0_2 = arith.constant 0 : index
    %5 = vector.load %arg1[%c0, %c0_1, %c0_2] : memref<1x72x10xf32, #tpu.memory_space<vmem>>, vector<1x72x10xf32>
    %6 = vector.shape_cast %5 : vector<1x72x10xf32> to vector<72x10xf32>
    %7 = vector.extract_strided_slice %6 {offsets = [0, 0], sizes = [64, 10], strides = [1, 1]} : vector<72x10xf32> to vector<64x10xf32>
    %8 = vector.extract_strided_slice %6 {offsets = [64, 0], sizes = [8, 10], strides = [1, 1]} : vector<72x10xf32> to vector<8x10xf32>
    %9 = arith.truncf %7 : vector<64x10xf32> to vector<64x10xbf16>
    %c0_3 = arith.constant 0 : index
    %c0_4 = arith.constant 0 : index
    %10 = vector.load %arg2[%c0_3, %c0_4] : memref<10x32xbf16, #tpu.memory_space<vmem>>, vector<10x32xbf16>
    %cst = arith.constant dense<0.000000e+00> : vector<64x32xf32>
    %11 = tpu.matmul %9, %10, %cst {dimension_numbers = #tpu.dot_dimension_numbers<[1], [0], [0], [1], [0, 0, 1, 1], [], []>} : vector<64x10xbf16>, vector<10x32xbf16>, vector<64x32xf32> -> vector<64x32xf32>
    %c0_5 = arith.constant 0 : index
    %c0_6 = arith.constant 0 : index
    %12 = vector.load %arg3[%c0_5, %c0_6] : memref<1x32xf32, #tpu.memory_space<vmem>>, vector<1x32xf32>
    %13 = vector.broadcast %12 : vector<1x32xf32> to vector<64x32xf32>
    %14 = arith.addf %11, %13 : vector<64x32xf32>
    %cst_7 = arith.constant 0.000000e+00 : f32
    %15 = vector.broadcast %cst_7 : f32 to vector<64x32xf32>
    %16 = arith.maximumf %14, %15 : vector<64x32xf32>
    %17 = vector.extract_strided_slice %16 {offsets = [0, 0], sizes = [16, 32], strides = [1, 1]} : vector<64x32xf32> to vector<16x32xf32>
    %18 = vector.extract_strided_slice %16 {offsets = [16, 0], sizes = [16, 32], strides = [1, 1]} : vector<64x32xf32> to vector<16x32xf32>
    %19 = vector.extract_strided_slice %16 {offsets = [32, 0], sizes = [16, 32], strides = [1, 1]} : vector<64x32xf32> to vector<16x32xf32>
    %20 = vector.extract_strided_slice %16 {offsets = [48, 0], sizes = [16, 32], strides = [1, 1]} : vector<64x32xf32> to vector<16x32xf32>
    %c8_i32_8 = arith.constant 8 : i32
    %21 = tpu.dynamic_rotate %20 by %c8_i32_8 dim 0 : vector<16x32xf32>, i32 -> vector<16x32xf32>
    %cst_9 = arith.constant 0.000000e+00 : f32
    %22 = vector.shape_cast %2 : vector<16x1xi1> to vector<16x1xi1>
    %23 = vector.broadcast %22 : vector<16x1xi1> to vector<16x32xi1>
    %24 = vector.broadcast %cst_9 : f32 to vector<16x32xf32>
    %25 = arith.select %23, %21, %24 : vector<16x32xi1>, vector<16x32xf32>
    %26 = tpu.concatenate %25, %17, %18 in 1 : vector<16x32xf32>, vector<16x32xf32>, vector<16x32xf32> -> vector<16x96xf32>
    %27 = tpu.concatenate %18, %19, %20 in 1 : vector<16x32xf32>, vector<16x32xf32>, vector<16x32xf32> -> vector<16x96xf32>
    %28 = tpu.concatenate %26, %27 in 0 : vector<16x96xf32>, vector<16x96xf32> -> vector<32x96xf32>
    %29 = arith.truncf %28 : vector<32x96xf32> to vector<32x96xbf16>
    %c0_10 = arith.constant 0 : index
    %c0_11 = arith.constant 0 : index
    %30 = vector.load %arg4[%c0_10, %c0_11] : memref<96x64xbf16, #tpu.memory_space<vmem>>, vector<96x64xbf16>
    %cst_12 = arith.constant dense<0.000000e+00> : vector<32x64xf32>
    %31 = tpu.matmul %29, %30, %cst_12 {dimension_numbers = #tpu.dot_dimension_numbers<[1], [0], [0], [1], [0, 0, 1, 1], [], []>} : vector<32x96xbf16>, vector<96x64xbf16>, vector<32x64xf32> -> vector<32x64xf32>
    %c0_13 = arith.constant 0 : index
    %c0_14 = arith.constant 0 : index
    %32 = vector.load %arg5[%c0_13, %c0_14] : memref<1x64xf32, #tpu.memory_space<vmem>>, vector<1x64xf32>
    %33 = vector.broadcast %32 : vector<1x64xf32> to vector<32x64xf32>
    %34 = arith.addf %31, %33 : vector<32x64xf32>
    %cst_15 = arith.constant 0.000000e+00 : f32
    %35 = vector.broadcast %cst_15 : f32 to vector<32x64xf32>
    %36 = arith.maximumf %34, %35 : vector<32x64xf32>
    %37 = vector.extract_strided_slice %36 {offsets = [0, 0], sizes = [16, 64], strides = [1, 1]} : vector<32x64xf32> to vector<16x64xf32>
    %38 = vector.extract_strided_slice %36 {offsets = [16, 0], sizes = [16, 64], strides = [1, 1]} : vector<32x64xf32> to vector<16x64xf32>
    %c8_i32_16 = arith.constant 8 : i32
    %39 = tpu.dynamic_rotate %38 by %c8_i32_16 dim 0 : vector<16x64xf32>, i32 -> vector<16x64xf32>
    %cst_17 = arith.constant 0.000000e+00 : f32
    %40 = vector.shape_cast %2 : vector<16x1xi1> to vector<16x1xi1>
    %41 = vector.broadcast %40 : vector<16x1xi1> to vector<16x64xi1>
    %42 = vector.broadcast %cst_17 : f32 to vector<16x64xf32>
    %43 = arith.select %41, %39, %42 : vector<16x64xi1>, vector<16x64xf32>
    %44 = tpu.concatenate %43, %37, %38 in 1 : vector<16x64xf32>, vector<16x64xf32>, vector<16x64xf32> -> vector<16x192xf32>
    %45 = arith.truncf %44 : vector<16x192xf32> to vector<16x192xbf16>
    %c0_18 = arith.constant 0 : index
    %c0_19 = arith.constant 0 : index
    %46 = vector.load %arg6[%c0_18, %c0_19] : memref<192x128xbf16, #tpu.memory_space<vmem>>, vector<192x128xbf16>
    %cst_20 = arith.constant dense<0.000000e+00> : vector<16x128xf32>
    %47 = tpu.matmul %45, %46, %cst_20 {dimension_numbers = #tpu.dot_dimension_numbers<[1], [0], [0], [1], [0, 0, 1, 1], [], []>} : vector<16x192xbf16>, vector<192x128xbf16>, vector<16x128xf32> -> vector<16x128xf32>
    %c0_21 = arith.constant 0 : index
    %c0_22 = arith.constant 0 : index
    %48 = vector.load %arg7[%c0_21, %c0_22] : memref<1x128xf32, #tpu.memory_space<vmem>>, vector<1x128xf32>
    %49 = vector.broadcast %48 : vector<1x128xf32> to vector<16x128xf32>
    %50 = arith.addf %47, %49 : vector<16x128xf32>
    %cst_23 = arith.constant 0.000000e+00 : f32
    %51 = vector.broadcast %cst_23 : f32 to vector<16x128xf32>
    %52 = arith.maximumf %50, %51 : vector<16x128xf32>
    %cst_24 = arith.constant 0.000000e+00 : f32
    %53 = vector.broadcast %cst_24 : f32 to vector<8x20xf32>
    %54 = vector.extract_strided_slice %52 {offsets = [0, 0], sizes = [8, 128], strides = [1, 1]} : vector<16x128xf32> to vector<8x128xf32>
    %55 = arith.truncf %54 : vector<8x128xf32> to vector<8x128xbf16>
    %c0_25 = arith.constant 0 : index
    %c0_26 = arith.constant 0 : index
    %c0_27 = arith.constant 0 : index
    %56 = vector.load %arg8[%c0_25, %c0_26, %c0_27] : memref<2x128x20xbf16, #tpu.memory_space<vmem>>, vector<1x128x20xbf16>
    %57 = vector.shape_cast %56 : vector<1x128x20xbf16> to vector<128x20xbf16>
    %cst_28 = arith.constant dense<0.000000e+00> : vector<8x20xf32>
    %58 = tpu.matmul %55, %57, %cst_28 {dimension_numbers = #tpu.dot_dimension_numbers<[1], [0], [0], [1], [0, 0, 1, 1], [], []>} : vector<8x128xbf16>, vector<128x20xbf16>, vector<8x20xf32> -> vector<8x20xf32>
    %59 = arith.addf %53, %58 : vector<8x20xf32>
    %60 = vector.extract_strided_slice %52 {offsets = [8, 0], sizes = [8, 128], strides = [1, 1]} : vector<16x128xf32> to vector<8x128xf32>
    %61 = arith.truncf %60 : vector<8x128xf32> to vector<8x128xbf16>
    %c1 = arith.constant 1 : index
    %c0_29 = arith.constant 0 : index
    %c0_30 = arith.constant 0 : index
    %62 = vector.load %arg8[%c1, %c0_29, %c0_30] : memref<2x128x20xbf16, #tpu.memory_space<vmem>>, vector<1x128x20xbf16>
    %63 = vector.shape_cast %62 : vector<1x128x20xbf16> to vector<128x20xbf16>
    %cst_31 = arith.constant dense<0.000000e+00> : vector<8x20xf32>
    %64 = tpu.matmul %61, %63, %cst_31 {dimension_numbers = #tpu.dot_dimension_numbers<[1], [0], [0], [1], [0, 0, 1, 1], [], []>} : vector<8x128xbf16>, vector<128x20xbf16>, vector<8x20xf32> -> vector<8x20xf32>
    %65 = arith.addf %59, %64 : vector<8x20xf32>
    %c0_32 = arith.constant 0 : index
    %c0_33 = arith.constant 0 : index
    %66 = vector.load %arg9[%c0_32, %c0_33] : memref<1x20xf32, #tpu.memory_space<vmem>>, vector<1x20xf32>
    %67 = vector.broadcast %66 : vector<1x20xf32> to vector<8x20xf32>
    %68 = arith.addf %65, %67 : vector<8x20xf32>
    %c0_34 = arith.constant 0 : index
    %c0_35 = arith.constant 0 : index
    %c0_36 = arith.constant 0 : index
    %69 = vector.load %arg19[%c0_34, %c0_35, %c0_36] : memref<1x8x20xf32, #tpu.memory_space<vmem>>, vector<1x8x20xf32>
    %70 = vector.shape_cast %69 : vector<1x8x20xf32> to vector<8x20xf32>
    %71 = vector.shape_cast %68 : vector<8x20xf32> to vector<1x8x20xf32>
    tpu.vector_store %arg19[%c0_34, %c0_35, %c0_36], %71 {strides = array<i32>} : memref<1x8x20xf32, #tpu.memory_space<vmem>>, vector<1x8x20xf32>,
    %72 = vector.extract_strided_slice %68 {offsets = [0, 0], sizes = [8, 10], strides = [1, 1]} : vector<8x20xf32> to vector<8x10xf32>
    %73 = vector.extract_strided_slice %68 {offsets = [0, 10], sizes = [8, 10], strides = [1, 1]} : vector<8x20xf32> to vector<8x10xf32>
    %cst_37 = arith.constant 5.000000e-01 : f32
    %74 = vector.broadcast %cst_37 : f32 to vector<8x10xf32>
    %75 = arith.mulf %74, %73 : vector<8x10xf32>
    %76 = math.exp %75 : vector<8x10xf32>
    %77 = arith.mulf %8, %76 : vector<8x10xf32>
    %78 = arith.addf %72, %77 : vector<8x10xf32>
    %79 = arith.truncf %78 : vector<8x10xf32> to vector<8x10xbf16>
    %c0_38 = arith.constant 0 : index
    %c0_39 = arith.constant 0 : index
    %c0_40 = arith.constant 0 : index
    %80 = vector.load %arg10[%c0_38, %c0_39, %c0_40] : memref<2x10x128xbf16, #tpu.memory_space<vmem>>, vector<1x10x128xbf16>
    %81 = vector.shape_cast %80 : vector<1x10x128xbf16> to vector<10x128xbf16>
    %cst_41 = arith.constant dense<0.000000e+00> : vector<8x128xf32>
    %82 = tpu.matmul %79, %81, %cst_41 {dimension_numbers = #tpu.dot_dimension_numbers<[1], [0], [0], [1], [0, 0, 1, 1], [], []>} : vector<8x10xbf16>, vector<10x128xbf16>, vector<8x128xf32> -> vector<8x128xf32>
    %c1_42 = arith.constant 1 : index
    %c0_43 = arith.constant 0 : index
    %c0_44 = arith.constant 0 : index
    %83 = vector.load %arg10[%c1_42, %c0_43, %c0_44] : memref<2x10x128xbf16, #tpu.memory_space<vmem>>, vector<1x10x128xbf16>
    %84 = vector.shape_cast %83 : vector<1x10x128xbf16> to vector<10x128xbf16>
    %cst_45 = arith.constant dense<0.000000e+00> : vector<8x128xf32>
    %85 = tpu.matmul %79, %84, %cst_45 {dimension_numbers = #tpu.dot_dimension_numbers<[1], [0], [0], [1], [0, 0, 1, 1], [], []>} : vector<8x10xbf16>, vector<10x128xbf16>, vector<8x128xf32> -> vector<8x128xf32>
    %86 = tpu.concatenate %82, %85 in 0 : vector<8x128xf32>, vector<8x128xf32> -> vector<16x128xf32>
    %c0_46 = arith.constant 0 : index
    %c0_47 = arith.constant 0 : index
    %87 = vector.load %arg11[%c0_46, %c0_47] : memref<16x128xf32, #tpu.memory_space<vmem>>, vector<16x128xf32>
    %88 = arith.addf %86, %87 : vector<16x128xf32>
    %cst_48 = arith.constant 0.000000e+00 : f32
    %89 = vector.broadcast %cst_48 : f32 to vector<16x128xf32>
    %90 = arith.maximumf %88, %89 : vector<16x128xf32>
    %c8_i32_49 = arith.constant 8 : i32
    %91 = tpu.dynamic_rotate %90 by %c8_i32_49 dim 0 : vector<16x128xf32>, i32 -> vector<16x128xf32>
    %cst_50 = arith.constant 0.000000e+00 : f32
    %92 = vector.shape_cast %4 : vector<16x1xi1> to vector<16x1xi1>
    %93 = vector.broadcast %92 : vector<16x1xi1> to vector<16x128xi1>
    %94 = vector.broadcast %cst_50 : f32 to vector<16x128xf32>
    %95 = arith.select %93, %91, %94 : vector<16x128xi1>, vector<16x128xf32>
    %96 = tpu.concatenate %90, %95 in 1 : vector<16x128xf32>, vector<16x128xf32> -> vector<16x256xf32>
    %97 = arith.truncf %96 : vector<16x256xf32> to vector<16x256xbf16>
    %c0_51 = arith.constant 0 : index
    %c0_52 = arith.constant 0 : index
    %98 = vector.load %arg12[%c0_51, %c0_52] : memref<256x128xbf16, #tpu.memory_space<vmem>>, vector<256x128xbf16>
    %cst_53 = arith.constant dense<0.000000e+00> : vector<16x128xf32>
    %99 = tpu.matmul %97, %98, %cst_53 {dimension_numbers = #tpu.dot_dimension_numbers<[1], [0], [0], [1], [0, 0, 1, 1], [], []>} : vector<16x256xbf16>, vector<256x128xbf16>, vector<16x128xf32> -> vector<16x128xf32>
    %c0_54 = arith.constant 0 : index
    %c0_55 = arith.constant 0 : index
    %100 = vector.load %arg13[%c0_54, %c0_55] : memref<1x128xf32, #tpu.memory_space<vmem>>, vector<1x128xf32>
    %101 = vector.broadcast %100 : vector<1x128xf32> to vector<16x128xf32>
    %102 = arith.addf %99, %101 : vector<16x128xf32>
    %cst_56 = arith.constant 0.000000e+00 : f32
    %103 = vector.broadcast %cst_56 : f32 to vector<16x128xf32>
    %104 = arith.maximumf %102, %103 : vector<16x128xf32>
    %105 = vector.extract_strided_slice %104 {offsets = [0, 0], sizes = [16, 64], strides = [1, 1]} : vector<16x128xf32> to vector<16x64xf32>
    %c8_i32_57 = arith.constant 8 : i32
    %106 = tpu.dynamic_rotate %105 by %c8_i32_57 dim 0 : vector<16x64xf32>, i32 -> vector<16x64xf32>
    %cst_58 = arith.constant 0.000000e+00 : f32
    %107 = vector.shape_cast %4 : vector<16x1xi1> to vector<16x1xi1>
    %108 = vector.broadcast %107 : vector<16x1xi1> to vector<16x64xi1>
    %109 = vector.broadcast %cst_58 : f32 to vector<16x64xf32>
    %110 = arith.select %108, %106, %109 : vector<16x64xi1>, vector<16x64xf32>
    %111 = tpu.concatenate %104, %110 in 1 : vector<16x128xf32>, vector<16x64xf32> -> vector<16x192xf32>
    %112 = arith.truncf %111 : vector<16x192xf32> to vector<16x192xbf16>
    %c0_59 = arith.constant 0 : index
    %c0_60 = arith.constant 0 : index
    %113 = vector.load %arg14[%c0_59, %c0_60] : memref<192x128xbf16, #tpu.memory_space<vmem>>, vector<192x128xbf16>
    %cst_61 = arith.constant dense<0.000000e+00> : vector<16x128xf32>
    %114 = tpu.matmul %112, %113, %cst_61 {dimension_numbers = #tpu.dot_dimension_numbers<[1], [0], [0], [1], [0, 0, 1, 1], [], []>} : vector<16x192xbf16>, vector<192x128xbf16>, vector<16x128xf32> -> vector<16x128xf32>
    %c0_62 = arith.constant 0 : index
    %c0_63 = arith.constant 0 : index
    %115 = vector.load %arg15[%c0_62, %c0_63] : memref<1x128xf32, #tpu.memory_space<vmem>>, vector<1x128xf32>
    %116 = vector.broadcast %115 : vector<1x128xf32> to vector<16x128xf32>
    %117 = arith.addf %114, %116 : vector<16x128xf32>
    %cst_64 = arith.constant 0.000000e+00 : f32
    %118 = vector.broadcast %cst_64 : f32 to vector<16x128xf32>
    %119 = arith.maximumf %117, %118 : vector<16x128xf32>
    %120 = vector.extract_strided_slice %119 {offsets = [0, 0], sizes = [16, 32], strides = [1, 1]} : vector<16x128xf32> to vector<16x32xf32>
    %c8_i32_65 = arith.constant 8 : i32
    %121 = tpu.dynamic_rotate %120 by %c8_i32_65 dim 0 : vector<16x32xf32>, i32 -> vector<16x32xf32>
    %cst_66 = arith.constant 0.000000e+00 : f32
    %122 = vector.shape_cast %4 : vector<16x1xi1> to vector<16x1xi1>
    %123 = vector.broadcast %122 : vector<16x1xi1> to vector<16x32xi1>
    %124 = vector.broadcast %cst_66 : f32 to vector<16x32xf32>
    %125 = arith.select %123, %121, %124 : vector<16x32xi1>, vector<16x32xf32>
    %126 = tpu.concatenate %119, %125 in 1 : vector<16x128xf32>, vector<16x32xf32> -> vector<16x160xf32>
    %127 = arith.truncf %126 : vector<16x160xf32> to vector<16x160xbf16>
    %c0_67 = arith.constant 0 : index
    %c0_68 = arith.constant 0 : index
    %128 = vector.load %arg16[%c0_67, %c0_68] : memref<160x8xbf16, #tpu.memory_space<vmem>>, vector<160x8xbf16>
    %cst_69 = arith.constant dense<0.000000e+00> : vector<16x8xf32>
    %129 = tpu.matmul %127, %128, %cst_69 {dimension_numbers = #tpu.dot_dimension_numbers<[1], [0], [0], [1], [0, 0, 1, 1], [], []>} : vector<16x160xbf16>, vector<160x8xbf16>, vector<16x8xf32> -> vector<16x8xf32>
    %c0_70 = arith.constant 0 : index
    %c0_71 = arith.constant 0 : index
    %130 = vector.load %arg17[%c0_70, %c0_71] : memref<1x8xf32, #tpu.memory_space<vmem>>, vector<1x8xf32>
    %131 = vector.broadcast %130 : vector<1x8xf32> to vector<16x8xf32>
    %132 = arith.addf %129, %131 : vector<16x8xf32>
    %c0_72 = arith.constant 0 : index
    %c0_73 = arith.constant 0 : index
    %c0_74 = arith.constant 0 : index
    %133 = vector.load %arg18[%c0_72, %c0_73, %c0_74] : memref<1x16x8xf32, #tpu.memory_space<vmem>>, vector<1x16x8xf32>
    %134 = vector.shape_cast %133 : vector<1x16x8xf32> to vector<16x8xf32>
    %135 = vector.shape_cast %132 : vector<16x8xf32> to vector<1x16x8xf32>
    tpu.vector_store %arg18[%c0_72, %c0_73, %c0_74], %135 {strides = array<i32>} : memref<1x16x8xf32, #tpu.memory_space<vmem>>, vector<1x16x8xf32>,
    return
  }
  func.func @transform_0(%arg0: i32) -> (i32, i32, i32) {
    %c0_i32 = arith.constant 0 : i32
    %c0_i32_0 = arith.constant 0 : i32
    %c0_i32_1 = arith.constant 0 : i32
    return %arg0, %c0_i32, %c0_i32_0 : i32, i32, i32
  }
  func.func @transform_1(%arg0: i32) -> (i32, i32) {
    %c0_i32 = arith.constant 0 : i32
    %c0_i32_0 = arith.constant 0 : i32
    %c0_i32_1 = arith.constant 0 : i32
    return %c0_i32, %c0_i32_0 : i32, i32
  }
  func.func @transform_2(%arg0: i32) -> (i32, i32) {
    %c0_i32 = arith.constant 0 : i32
    %c0_i32_0 = arith.constant 0 : i32
    %c0_i32_1 = arith.constant 0 : i32
    return %c0_i32, %c0_i32_0 : i32, i32
  }
  func.func @transform_3(%arg0: i32) -> (i32, i32) {
    %c0_i32 = arith.constant 0 : i32
    %c0_i32_0 = arith.constant 0 : i32
    %c0_i32_1 = arith.constant 0 : i32
    return %c0_i32, %c0_i32_0 : i32, i32
  }
  func.func @transform_4(%arg0: i32) -> (i32, i32) {
    %c0_i32 = arith.constant 0 : i32
    %c0_i32_0 = arith.constant 0 : i32
    %c0_i32_1 = arith.constant 0 : i32
    return %c0_i32, %c0_i32_0 : i32, i32
  }
  func.func @transform_5(%arg0: i32) -> (i32, i32) {
    %c0_i32 = arith.constant 0 : i32
    %c0_i32_0 = arith.constant 0 : i32
    %c0_i32_1 = arith.constant 0 : i32
    return %c0_i32, %c0_i32_0 : i32, i32
  }
  func.func @transform_6(%arg0: i32) -> (i32, i32) {
    %c0_i32 = arith.constant 0 : i32
    %c0_i32_0 = arith.constant 0 : i32
    %c0_i32_1 = arith.constant 0 : i32
    return %c0_i32, %c0_i32_0 : i32, i32
  }
  func.func @transform_7(%arg0: i32) -> (i32, i32, i32) {
    %c0_i32 = arith.constant 0 : i32
    %c0_i32_0 = arith.constant 0 : i32
    %c0_i32_1 = arith.constant 0 : i32
    %c0_i32_2 = arith.constant 0 : i32
    return %c0_i32, %c0_i32_0, %c0_i32_1 : i32, i32, i32
  }
  func.func @transform_8(%arg0: i32) -> (i32, i32) {
    %c0_i32 = arith.constant 0 : i32
    %c0_i32_0 = arith.constant 0 : i32
    %c0_i32_1 = arith.constant 0 : i32
    return %c0_i32, %c0_i32_0 : i32, i32
  }
  func.func @transform_9(%arg0: i32) -> (i32, i32, i32) {
    %c0_i32 = arith.constant 0 : i32
    %c0_i32_0 = arith.constant 0 : i32
    %c0_i32_1 = arith.constant 0 : i32
    %c0_i32_2 = arith.constant 0 : i32
    return %c0_i32, %c0_i32_0, %c0_i32_1 : i32, i32, i32
  }
  func.func @transform_10(%arg0: i32) -> (i32, i32) {
    %c0_i32 = arith.constant 0 : i32
    %c0_i32_0 = arith.constant 0 : i32
    %c0_i32_1 = arith.constant 0 : i32
    return %c0_i32, %c0_i32_0 : i32, i32
  }
  func.func @transform_11(%arg0: i32) -> (i32, i32) {
    %c0_i32 = arith.constant 0 : i32
    %c0_i32_0 = arith.constant 0 : i32
    %c0_i32_1 = arith.constant 0 : i32
    return %c0_i32, %c0_i32_0 : i32, i32
  }
  func.func @transform_12(%arg0: i32) -> (i32, i32) {
    %c0_i32 = arith.constant 0 : i32
    %c0_i32_0 = arith.constant 0 : i32
    %c0_i32_1 = arith.constant 0 : i32
    return %c0_i32, %c0_i32_0 : i32, i32
  }
  func.func @transform_13(%arg0: i32) -> (i32, i32) {
    %c0_i32 = arith.constant 0 : i32
    %c0_i32_0 = arith.constant 0 : i32
    %c0_i32_1 = arith.constant 0 : i32
    return %c0_i32, %c0_i32_0 : i32, i32
  }
  func.func @transform_14(%arg0: i32) -> (i32, i32) {
    %c0_i32 = arith.constant 0 : i32
    %c0_i32_0 = arith.constant 0 : i32
    %c0_i32_1 = arith.constant 0 : i32
    return %c0_i32, %c0_i32_0 : i32, i32
  }
  func.func @transform_15(%arg0: i32) -> (i32, i32) {
    %c0_i32 = arith.constant 0 : i32
    %c0_i32_0 = arith.constant 0 : i32
    %c0_i32_1 = arith.constant 0 : i32
    return %c0_i32, %c0_i32_0 : i32, i32
  }
  func.func @transform_16(%arg0: i32) -> (i32, i32) {
    %c0_i32 = arith.constant 0 : i32
    %c0_i32_0 = arith.constant 0 : i32
    %c0_i32_1 = arith.constant 0 : i32
    return %c0_i32, %c0_i32_0 : i32, i32
  }
  func.func @transform_17(%arg0: i32) -> (i32, i32, i32) {
    %c0_i32 = arith.constant 0 : i32
    %c0_i32_0 = arith.constant 0 : i32
    %c0_i32_1 = arith.constant 0 : i32
    return %arg0, %c0_i32, %c0_i32_0 : i32, i32, i32
  }
  func.func @transform_18(%arg0: i32) -> (i32, i32, i32) {
    %c0_i32 = arith.constant 0 : i32
    %c0_i32_0 = arith.constant 0 : i32
    %c0_i32_1 = arith.constant 0 : i32
    return %arg0, %c0_i32, %c0_i32_0 : i32, i32, i32
  }
}

</mosaic_0001>

<llo_original>
// kernel: _lambda_.1
$region0: #{_lambda_.1}
  #allocation0 [shape = 'u32[]', space=smem, size = 0x4, offset = 0x4, fixed_abs, tag = 'smem constant byte address 0x4 - core index']
  #allocation1 [shape = 'u32[144,128]{1,0:T(1,128)}', space=vmem, size = 0x12000, scoped, tag = 'internal scratch']
  %s0 = inlined_call_operand.vmem [shape: f32[1,72,10], index: 0, kind: input, shape index: {}]
  %s1 = inlined_call_operand.vmem [shape: bf16[10,32], index: 1, kind: input, shape index: {}]
  %s2 = inlined_call_operand.vmem [shape: f32[1,32], index: 2, kind: input, shape index: {}]
  %s3 = inlined_call_operand.vmem [shape: bf16[96,64], index: 3, kind: input, shape index: {}]
  %s4 = inlined_call_operand.vmem [shape: f32[1,64], index: 4, kind: input, shape index: {}]
  %s5 = inlined_call_operand.vmem [shape: bf16[192,128], index: 5, kind: input, shape index: {}]
  %s6 = inlined_call_operand.vmem [shape: f32[1,128], index: 6, kind: input, shape index: {}]
  %s7 = inlined_call_operand.vmem [shape: bf16[2,128,20], index: 7, kind: input, shape index: {}]
  %s8 = inlined_call_operand.vmem [shape: f32[1,20], index: 8, kind: input, shape index: {}]
  %s9 = inlined_call_operand.vmem [shape: bf16[2,10,128], index: 9, kind: input, shape index: {}]
  %s10 = inlined_call_operand.vmem [shape: f32[16,128], index: 10, kind: input, shape index: {}]
  %s11 = inlined_call_operand.vmem [shape: bf16[256,128], index: 11, kind: input, shape index: {}]
  %s12 = inlined_call_operand.vmem [shape: f32[1,128], index: 12, kind: input, shape index: {}]
  %s13 = inlined_call_operand.vmem [shape: bf16[192,128], index: 13, kind: input, shape index: {}]
  %s14 = inlined_call_operand.vmem [shape: f32[1,128], index: 14, kind: input, shape index: {}]
  %s15 = inlined_call_operand.vmem [shape: bf16[160,8], index: 15, kind: input, shape index: {}]
  %s16 = inlined_call_operand.vmem [shape: f32[1,8], index: 16, kind: input, shape index: {}]
  %s17 = inlined_call_operand.vmem [shape: f32[1,16,8], index: 17, kind: output, shape index: {0}]
  %s18 = inlined_call_operand.vmem [shape: f32[1,8,20], index: 18, kind: output, shape index: {1}]
  %19 = xla_tuple %s17, %s18
  %s20 = sld [smem:[#allocation0]]
  $region86: #{_lambda_.1} parent=0
    _
  %s22 = ssub.s32 1, %s20
  %s23 = scalar_select 0, %s22, %s20
  // Predicated region
  $region2: #{_lambda_.1} parent=0 // pred_check
    _
  $region3: #{_lambda_.1} parent=0 // pred_check_branch
    %25 = sbr.rel (0) target = $region5
  $region4: #{_lambda_.1} parent=0 // pred_region
    _
  $region5: #{_lambda_.1} parent=0 // pred_fallthru
    _
  // Predicated region
  $region6: #{_lambda_.1} parent=0 // pred_check
    _
  $region7: #{_lambda_.1} parent=0 // pred_check_branch
    %27 = sbr.rel (0) target = $region9
  $region8: #{_lambda_.1} parent=0 // pred_region
    _
  $region9: #{_lambda_.1} parent=0 // pred_fallthru
    _
  // Predicated region
  $region10: #{_lambda_.1} parent=0 // pred_check
    _
  $region11: #{_lambda_.1} parent=0 // pred_check_branch
    %29 = sbr.rel (0) target = $region13
  $region12: #{_lambda_.1} parent=0 // pred_region
    _
  $region13: #{_lambda_.1} parent=0 // pred_fallthru
    _
  // Predicated region
  $region14: #{_lambda_.1} parent=0 // pred_check
    _
  $region15: #{_lambda_.1} parent=0 // pred_check_branch
    %31 = sbr.rel (0) target = $region17
  $region16: #{_lambda_.1} parent=0 // pred_region
    _
  $region17: #{_lambda_.1} parent=0 // pred_fallthru
    _
  // Predicated region
  $region18: #{_lambda_.1} parent=0 // pred_check
    _
  $region19: #{_lambda_.1} parent=0 // pred_check_branch
    %33 = sbr.rel (0) target = $region21
  $region20: #{_lambda_.1} parent=0 // pred_region
    _
  $region21: #{_lambda_.1} parent=0 // pred_fallthru
    _
  // Predicated region
  $region22: #{_lambda_.1} parent=0 // pred_check
    _
  $region23: #{_lambda_.1} parent=0 // pred_check_branch
    %35 = sbr.rel (0) target = $region25
  $region24: #{_lambda_.1} parent=0 // pred_region
    _
  $region25: #{_lambda_.1} parent=0 // pred_fallthru
    _
  // Predicated region
  $region26: #{_lambda_.1} parent=0 // pred_check
    _
  $region27: #{_lambda_.1} parent=0 // pred_check_branch
    %37 = sbr.rel (0) target = $region29
  $region28: #{_lambda_.1} parent=0 // pred_region
    _
  $region29: #{_lambda_.1} parent=0 // pred_fallthru
    _
  // Predicated region
  $region30: #{_lambda_.1} parent=0 // pred_check
    _
  $region31: #{_lambda_.1} parent=0 // pred_check_branch
    %39 = sbr.rel (0) target = $region33
  $region32: #{_lambda_.1} parent=0 // pred_region
    _
  $region33: #{_lambda_.1} parent=0 // pred_fallthru
    _
  // Predicated region
  $region34: #{_lambda_.1} parent=0 // pred_check
    _
  $region35: #{_lambda_.1} parent=0 // pred_check_branch
    %41 = sbr.rel (0) target = $region37
  $region36: #{_lambda_.1} parent=0 // pred_region
    _
  $region37: #{_lambda_.1} parent=0 // pred_fallthru
    _
  // Predicated region
  $region38: #{_lambda_.1} parent=0 // pred_check
    _
  $region39: #{_lambda_.1} parent=0 // pred_check_branch
    %43 = sbr.rel (0) target = $region41
  $region40: #{_lambda_.1} parent=0 // pred_region
    _
  $region41: #{_lambda_.1} parent=0 // pred_fallthru
    _
  // Predicated region
  $region42: #{_lambda_.1} parent=0 // pred_check
    _
  $region43: #{_lambda_.1} parent=0 // pred_check_branch
    %45 = sbr.rel (0) target = $region45
  $region44: #{_lambda_.1} parent=0 // pred_region
    _
  $region45: #{_lambda_.1} parent=0 // pred_fallthru
    _
  // Predicated region
  $region46: #{_lambda_.1} parent=0 // pred_check
    _
  $region47: #{_lambda_.1} parent=0 // pred_check_branch
    %47 = sbr.rel (0) target = $region49
  $region48: #{_lambda_.1} parent=0 // pred_region
    _
  $region49: #{_lambda_.1} parent=0 // pred_fallthru
    _
  // Predicated region
  $region50: #{_lambda_.1} parent=0 // pred_check
    _
  $region51: #{_lambda_.1} parent=0 // pred_check_branch
    %49 = sbr.rel (0) target = $region53
  $region52: #{_lambda_.1} parent=0 // pred_region
    _
  $region53: #{_lambda_.1} parent=0 // pred_fallthru
    _
  // Predicated region
  $region54: #{_lambda_.1} parent=0 // pred_check
    _
  $region55: #{_lambda_.1} parent=0 // pred_check_branch
    %51 = sbr.rel (0) target = $region57
  $region56: #{_lambda_.1} parent=0 // pred_region
    _
  $region57: #{_lambda_.1} parent=0 // pred_fallthru
    _
  // Predicated region
  $region58: #{_lambda_.1} parent=0 // pred_check
    _
  $region59: #{_lambda_.1} parent=0 // pred_check_branch
    %53 = sbr.rel (0) target = $region61
  $region60: #{_lambda_.1} parent=0 // pred_region
    _
  $region61: #{_lambda_.1} parent=0 // pred_fallthru
    _
  // Predicated region
  $region62: #{_lambda_.1} parent=0 // pred_check
    _
  $region63: #{_lambda_.1} parent=0 // pred_check_branch
    %55 = sbr.rel (0) target = $region65
  $region64: #{_lambda_.1} parent=0 // pred_region
    _
  $region65: #{_lambda_.1} parent=0 // pred_fallthru
    _
  // Predicated region
  $region66: #{_lambda_.1} parent=0 // pred_check
    _
  $region67: #{_lambda_.1} parent=0 // pred_check_branch
    %57 = sbr.rel (0) target = $region69
  $region68: #{_lambda_.1} parent=0 // pred_region
    _
  $region69: #{_lambda_.1} parent=0 // pred_fallthru
    _
  %v59 = vlaneseq
  %v60 = vshrl.u32 %v59, 7
  %v61 = vadd.s32 %v60, 8
  %vm62 = vcmp.ge.s32.totalorder %v60, 8
  %vm63 = vcmp.ge.s32.totalorder %v61, 8
  %vm64 = vcmp.lt.s32.totalorder %v60, 8
  %vm65 = vcmp.lt.s32.totalorder %v61, 8
  %v66 = vld [vmem:[%s0] sm:$0xff]
  %v67 = vld [vmem:[%s0 + $0x8] sm:$0xff]
  %v68 = vld [vmem:[%s0 + $0x10] sm:$0xff]
  %v69 = vld [vmem:[%s0 + $0x18] sm:$0xff]
  %v70 = vld [vmem:[%s0 + $0x20] sm:$0xff]
  %v71 = vld [vmem:[%s0 + $0x28] sm:$0xff]
  %v72 = vld [vmem:[%s0 + $0x30] sm:$0xff]
  %v73 = vld [vmem:[%s0 + $0x38] sm:$0xff]
  %v74 = vld [vmem:[%s0 + $0x40] sm:$0xff]
  %v75 = vpack.c.bf16 %v67, %v66
  %v76 = vpack.c.bf16 %v69, %v68
  %v77 = vpack.c.bf16 %v71, %v70
  %v78 = vpack.c.bf16 %v73, %v72
  %v79 = vld [vmem:[%s1] sm:$0xf]
  %v80 = vld [vmem:[%s1 + $0x4] sm:$0x1]
  %v81 = vld [vmem:[%s2] sm:$0x1]
  %v83 = vlaneseq
  %v84 = vshrl.u32 %v83, 7
  %v85 = vsub.s32 0, %v84
  %v86 = vrot.slane %v81, %v85
  %v90 = vunpack.c.l.b16 %v79
  %v91 = vunpack.c.l.b16 %v80
  %v92 = vpack.c.b16 %v91, %v90
  %vm93 = vcmask 80896
  %v95 = vsel %vm93, %v75, 0
  %v98 = vsel %vm93, %v76, 0
  %v101 = vsel %vm93, %v77, 0
  %v104 = vsel %vm93, %v78, 0
  %vm106 = vcmask 1044480
  %v108 = vsel %vm106, %v92, 0
  %110 = vmatprep.subr.bf16.mxu0 0
  %111 = vmatpush1.bf16.msra.mxu0 0
  %112 = vmatprep.subr.bf16.mxu0 0
  %113 = vmatpush1.bf16.msra.mxu0 0
  %114 = vmatprep.subr.bf16.mxu0 0
  %115 = vmatpush1.bf16.msra.mxu0 0
  %116 = vmatprep.subr.bf16.mxu0 0
  %117 = vmatpush1.bf16.msra.mxu0 0
  %118 = vmatprep.subr.bf16.mxu0 0
  %119 = vmatpush1.bf16.msra.mxu0 0
  %120 = vmatprep.subr.bf16.mxu0 0
  %121 = vmatpush1.bf16.msra.mxu0 0
  %122 = vmatprep.subr.bf16.mxu0 0
  %123 = vmatpush1.bf16.msra.mxu0 0
  %124 = vmatprep.subr.bf16.mxu0 0
  %125 = vmatpush1.bf16.msra.mxu0 %v108
  %126 = vmatprep.subr.bf16.mxu0 0
  %127 = vmatpush2.bf16.msra.mxu0 0
  %128 = vmatprep.subr.bf16.mxu0 0
  %129 = vmatpush2.bf16.msra.mxu0 0
  %130 = vmatprep.subr.bf16.mxu0 0
  %131 = vmatpush2.bf16.msra.mxu0 0
  %132 = vmatprep.subr.bf16.mxu0 0
  %133 = vmatpush2.bf16.msra.mxu0 0
  %134 = vmatprep.subr.bf16.mxu0 0
  %135 = vmatpush2.bf16.msra.mxu0 0
  %136 = vmatprep.subr.bf16.mxu0 0
  %137 = vmatpush2.bf16.msra.mxu0 0
  %138 = vmatprep.subr.bf16.mxu0 0
  %139 = vmatpush2.bf16.msra.mxu0 0
  %140 = vmatprep.subr.bf16.mxu0 0
  %141 = vmatpush2.bf16.msra.mxu0 0
  %142 = vmatprep.mubr.bf16.mxu0 0
  %143 = vmatmul.mubr.bf16.gmra.mxu0 %v95
  %v144 = vpop.f32.mrf.mxu0
  %v145 = vadd.f32 %v86, %v144
  %v146 = vpop.f32.mrf.mxu0
  %v147 = vpop.f32.mrf.mxu0
  %v148 = vadd.f32 %v86, %v147
  %v149 = vpop.f32.mrf.mxu0
  %150 = vmatprep.mubr.bf16.mxu0 0
  %151 = vmatmul.mubr.bf16.gmra.mxu0 %v98
  %v152 = vpop.f32.mrf.mxu0
  %v153 = vadd.f32 %v86, %v152
  %v154 = vpop.f32.mrf.mxu0
  %v155 = vpop.f32.mrf.mxu0
  %v156 = vadd.f32 %v86, %v155
  %v157 = vpop.f32.mrf.mxu0
  %158 = vmatprep.mubr.bf16.mxu0 0
  %159 = vmatmul.mubr.bf16.gmra.mxu0 %v101
  %v160 = vpop.f32.mrf.mxu0
  %v161 = vadd.f32 %v86, %v160
  %v162 = vpop.f32.mrf.mxu0
  %v163 = vpop.f32.mrf.mxu0
  %v164 = vadd.f32 %v86, %v163
  %v165 = vpop.f32.mrf.mxu0
  %166 = vmatprep.mubr.bf16.mxu0 0
  %167 = vmatmul.mubr.bf16.gmra.mxu0 %v104
  %v168 = vpop.f32.mrf.mxu0
  %v169 = vadd.f32 %v86, %v168
  %v170 = vpop.f32.mrf.mxu0
  %v171 = vpop.f32.mrf.mxu0
  %v172 = vadd.f32 %v86, %v171
  %v173 = vpop.f32.mrf.mxu0
  %174 = vdwg.mxu0
  %v175 = vmax.f32 %v145, 0.0
  %v176 = vmax.f32 %v148, 0.0
  %v177 = vmax.f32 %v153, 0.0
  %v178 = vmax.f32 %v156, 0.0
  %v179 = vmax.f32 %v161, 0.0
  %v180 = vmax.f32 %v164, 0.0
  %v181 = vmax.f32 %v169, 0.0
  %v182 = vmax.f32 %v172, 0.0
  %v183 = vsel %vm62, 1, 0
  %v184 = vsel %vm63, 1, 0
  %vm185 = vcmp.eq.s32.totalorder %v183, 1
  %vm186 = vcmp.eq.s32.totalorder %v184, 1
  %v187 = vsel %vm185, %v182, 0.0
  %v188 = vsel %vm186, %v181, 0.0
  %191 = vrot.lane.b32.xlu0 %v175, 32
  %v192 = vpop.permute.xlu0 %191
  %193 = vrot.lane.b32.xlu0 %v176, 32
  %v194 = vpop.permute.xlu0 %193
  %199 = vrot.lane.b32.xlu0 %v177, 64
  %v200 = vpop.permute.xlu0 %199
  %201 = vrot.lane.b32.xlu0 %v178, 64
  %v202 = vpop.permute.xlu0 %201
  %vm205 = vcmask 261120
  %v206 = vsel %vm205, %v187, %v192
  %v207 = vsel %vm205, %v188, %v194
  %vm208 = vcmask 523264
  %v209 = vsel %vm208, %v206, %v200
  %v210 = vsel %vm208, %v207, %v202
  %213 = vrot.lane.b32.xlu0 %v179, 32
  %v214 = vpop.permute.xlu0 %213
  %215 = vrot.lane.b32.xlu0 %v180, 32
  %v216 = vpop.permute.xlu0 %215
  %221 = vrot.lane.b32.xlu0 %v181, 64
  %v222 = vpop.permute.xlu0 %221
  %223 = vrot.lane.b32.xlu0 %v182, 64
  %v224 = vpop.permute.xlu0 %223
  %v227 = vsel %vm205, %v177, %v214
  %v228 = vsel %vm205, %v178, %v216
  %v229 = vsel %vm208, %v227, %v222
  %v230 = vsel %vm208, %v228, %v224
  %v231 = vpack.c.bf16 %v210, %v209
  %v232 = vpack.c.bf16 %v230, %v229
  %v233 = vld [vmem:[%s3] sm:$0xf]
  %v234 = vld [vmem:[%s3 + $0x4] sm:$0xf]
  %v235 = vld [vmem:[%s3 + $0x8] sm:$0xf]
  %v236 = vld [vmem:[%s3 + $0xc] sm:$0xf]
  %v237 = vld [vmem:[%s3 + $0x10] sm:$0xf]
  %v238 = vld [vmem:[%s3 + $0x14] sm:$0xf]
  %v239 = vld [vmem:[%s3 + $0x18] sm:$0xf]
  %v240 = vld [vmem:[%s3 + $0x1c] sm:$0xf]
  %v241 = vld [vmem:[%s3 + $0x20] sm:$0xf]
  %v242 = vld [vmem:[%s3 + $0x24] sm:$0xf]
  %v243 = vld [vmem:[%s3 + $0x28] sm:$0xf]
  %v244 = vld [vmem:[%s3 + $0x2c] sm:$0xf]
  %v245 = vld [vmem:[%s4] sm:$0x1]
  %v247 = vlaneseq
  %v248 = vshrl.u32 %v247, 7
  %v249 = vsub.s32 0, %v248
  %v250 = vrot.slane %v245, %v249
  %v264 = vunpack.c.l.b16 %v233
  %v265 = vunpack.c.l.b16 %v234
  %v266 = vunpack.c.l.b16 %v235
  %v267 = vunpack.c.l.b16 %v236
  %v268 = vunpack.c.l.b16 %v237
  %v269 = vunpack.c.l.b16 %v238
  %v270 = vunpack.c.l.b16 %v239
  %v271 = vunpack.c.l.b16 %v240
  %v272 = vunpack.c.l.b16 %v241
  %v273 = vunpack.c.l.b16 %v242
  %v274 = vunpack.c.l.b16 %v243
  %v275 = vunpack.c.l.b16 %v244
  %v276 = vpack.c.b16 %v265, %v264
  %v277 = vpack.c.b16 %v267, %v266
  %v278 = vpack.c.b16 %v269, %v268
  %v279 = vpack.c.b16 %v271, %v270
  %v280 = vpack.c.b16 %v273, %v272
  %v281 = vpack.c.b16 %v275, %v274
  %vm288 = vcmask 785408
  %v290 = vsel %vm288, %v231, 0
  %v293 = vsel %vm288, %v232, 0
  %295 = vmatprep.subr.bf16.mxu0 0
  %296 = vmatpush1.bf16.msra.mxu0 0
  %297 = vmatprep.subr.bf16.mxu0 0
  %298 = vmatpush1.bf16.msra.mxu0 0
  %299 = vmatprep.subr.bf16.mxu0 0
  %300 = vmatpush1.bf16.msra.mxu0 %v281
  %301 = vmatprep.subr.bf16.mxu0 0
  %302 = vmatpush1.bf16.msra.mxu0 %v280
  %303 = vmatprep.subr.bf16.mxu0 0
  %304 = vmatpush1.bf16.msra.mxu0 %v279
  %305 = vmatprep.subr.bf16.mxu0 0
  %306 = vmatpush1.bf16.msra.mxu0 %v278
  %307 = vmatprep.subr.bf16.mxu0 0
  %308 = vmatpush1.bf16.msra.mxu0 %v277
  %309 = vmatprep.subr.bf16.mxu0 0
  %310 = vmatpush1.bf16.msra.mxu0 %v276
  %311 = vmatprep.subr.bf16.mxu0 0
  %312 = vmatpush2.bf16.msra.mxu0 0
  %313 = vmatprep.subr.bf16.mxu0 0
  %314 = vmatpush2.bf16.msra.mxu0 0
  %315 = vmatprep.subr.bf16.mxu0 0
  %316 = vmatpush2.bf16.msra.mxu0 0
  %317 = vmatprep.subr.bf16.mxu0 0
  %318 = vmatpush2.bf16.msra.mxu0 0
  %319 = vmatprep.subr.bf16.mxu0 0
  %320 = vmatpush2.bf16.msra.mxu0 0
  %321 = vmatprep.subr.bf16.mxu0 0
  %322 = vmatpush2.bf16.msra.mxu0 0
  %323 = vmatprep.subr.bf16.mxu0 0
  %324 = vmatpush2.bf16.msra.mxu0 0
  %325 = vmatprep.subr.bf16.mxu0 0
  %326 = vmatpush2.bf16.msra.mxu0 0
  %327 = vmatprep.mubr.bf16.mxu0 0
  %328 = vmatmul.mubr.bf16.gmra.mxu0 %v290
  %v329 = vpop.f32.mrf.mxu0
  %v330 = vadd.f32 %v250, %v329
  %v331 = vpop.f32.mrf.mxu0
  %v332 = vpop.f32.mrf.mxu0
  %v333 = vadd.f32 %v250, %v332
  %v334 = vpop.f32.mrf.mxu0
  %335 = vmatprep.mubr.bf16.mxu0 0
  %336 = vmatmul.mubr.bf16.gmra.mxu0 %v293
  %v337 = vpop.f32.mrf.mxu0
  %v338 = vadd.f32 %v250, %v337
  %v339 = vpop.f32.mrf.mxu0
  %v340 = vpop.f32.mrf.mxu0
  %v341 = vadd.f32 %v250, %v340
  %v342 = vpop.f32.mrf.mxu0
  %343 = vdwg.mxu0
  %v344 = vmax.f32 %v330, 0.0
  %v345 = vmax.f32 %v333, 0.0
  %v346 = vmax.f32 %v338, 0.0
  %v347 = vmax.f32 %v341, 0.0
  %v348 = vsel %vm185, %v347, 0.0
  %v349 = vsel %vm186, %v346, 0.0
  %352 = vrot.lane.b32.xlu0 %v344, 64
  %v353 = vpop.permute.xlu0 %352
  %354 = vrot.lane.b32.xlu0 %v345, 64
  %v355 = vpop.permute.xlu0 %354
  %v358 = vsel %vm208, %v348, %v353
  %v359 = vsel %vm208, %v349, %v355
  %v360 = vpack.c.bf16 %v359, %v358
  %v361 = vpack.c.bf16 %v347, %v346
  %v362 = vld [vmem:[%s5] sm:$0xf]
  %v363 = vld [vmem:[%s5 + $0x4] sm:$0xf]
  %v364 = vld [vmem:[%s5 + $0x8] sm:$0xf]
  %v365 = vld [vmem:[%s5 + $0xc] sm:$0xf]
  %v366 = vld [vmem:[%s5 + $0x10] sm:$0xf]
  %v367 = vld [vmem:[%s5 + $0x14] sm:$0xf]
  %v368 = vld [vmem:[%s5 + $0x18] sm:$0xf]
  %v369 = vld [vmem:[%s5 + $0x1c] sm:$0xf]
  %v370 = vld [vmem:[%s5 + $0x20] sm:$0xf]
  %v371 = vld [vmem:[%s5 + $0x24] sm:$0xf]
  %v372 = vld [vmem:[%s5 + $0x28] sm:$0xf]
  %v373 = vld [vmem:[%s5 + $0x2c] sm:$0xf]
  %v374 = vld [vmem:[%s5 + $0x30] sm:$0xf]
  %v375 = vld [vmem:[%s5 + $0x34] sm:$0xf]
  %v376 = vld [vmem:[%s5 + $0x38] sm:$0xf]
  %v377 = vld [vmem:[%s5 + $0x3c] sm:$0xf]
  %v378 = vld [vmem:[%s5 + $0x40] sm:$0xf]
  %v379 = vld [vmem:[%s5 + $0x44] sm:$0xf]
  %v380 = vld [vmem:[%s5 + $0x48] sm:$0xf]
  %v381 = vld [vmem:[%s5 + $0x4c] sm:$0xf]
  %v382 = vld [vmem:[%s5 + $0x50] sm:$0xf]
  %v383 = vld [vmem:[%s5 + $0x54] sm:$0xf]
  %v384 = vld [vmem:[%s5 + $0x58] sm:$0xf]
  %v385 = vld [vmem:[%s5 + $0x5c] sm:$0xf]
  %v386 = vld [vmem:[%s6] sm:$0x1]
  %v388 = vlaneseq
  %v389 = vshrl.u32 %v388, 7
  %v390 = vsub.s32 0, %v389
  %v391 = vrot.slane %v386, %v390
  %v417 = vunpack.c.l.b16 %v362
  %v418 = vunpack.c.l.b16 %v363
  %v419 = vunpack.c.l.b16 %v364
  %v420 = vunpack.c.l.b16 %v365
  %v421 = vunpack.c.l.b16 %v366
  %v422 = vunpack.c.l.b16 %v367
  %v423 = vunpack.c.l.b16 %v368
  %v424 = vunpack.c.l.b16 %v369
  %v425 = vunpack.c.l.b16 %v370
  %v426 = vunpack.c.l.b16 %v371
  %v427 = vunpack.c.l.b16 %v372
  %v428 = vunpack.c.l.b16 %v373
  %v429 = vunpack.c.l.b16 %v374
  %v430 = vunpack.c.l.b16 %v375
  %v431 = vunpack.c.l.b16 %v376
  %v432 = vunpack.c.l.b16 %v377
  %v433 = vunpack.c.l.b16 %v378
  %v434 = vunpack.c.l.b16 %v379
  %v435 = vunpack.c.l.b16 %v380
  %v436 = vunpack.c.l.b16 %v381
  %v437 = vunpack.c.l.b16 %v382
  %v438 = vunpack.c.l.b16 %v383
  %v439 = vunpack.c.l.b16 %v384
  %v440 = vunpack.c.l.b16 %v385
  %v441 = vpack.c.b16 %v418, %v417
  %v442 = vpack.c.b16 %v420, %v419
  %v443 = vpack.c.b16 %v422, %v421
  %v444 = vpack.c.b16 %v424, %v423
  %v445 = vpack.c.b16 %v426, %v425
  %v446 = vpack.c.b16 %v428, %v427
  %v447 = vpack.c.b16 %v430, %v429
  %v448 = vpack.c.b16 %v432, %v431
  %v449 = vpack.c.b16 %v434, %v433
  %v450 = vpack.c.b16 %v436, %v435
  %v451 = vpack.c.b16 %v438, %v437
  %v452 = vpack.c.b16 %v440, %v439
  %v466 = vsel %vm208, %v361, 0
  %468 = vmatprep.subr.bf16.mxu0 0
  %469 = vmatpush1.bf16.msra.mxu0 %v448
  %470 = vmatprep.subr.bf16.mxu0 0
  %471 = vmatpush1.bf16.msra.mxu0 %v447
  %472 = vmatprep.subr.bf16.mxu0 0
  %473 = vmatpush1.bf16.msra.mxu0 %v446
  %474 = vmatprep.subr.bf16.mxu0 0
  %475 = vmatpush1.bf16.msra.mxu0 %v445
  %476 = vmatprep.subr.bf16.mxu0 0
  %477 = vmatpush1.bf16.msra.mxu0 %v444
  %478 = vmatprep.subr.bf16.mxu0 0
  %479 = vmatpush1.bf16.msra.mxu0 %v443
  %480 = vmatprep.subr.bf16.mxu0 0
  %481 = vmatpush1.bf16.msra.mxu0 %v442
  %482 = vmatprep.subr.bf16.mxu0 0
  %483 = vmatpush1.bf16.msra.mxu0 %v441
  %484 = vmatprep.subr.bf16.mxu0 0
  %485 = vmatpush2.bf16.msra.mxu0 0
  %486 = vmatprep.subr.bf16.mxu0 0
  %487 = vmatpush2.bf16.msra.mxu0 0
  %488 = vmatprep.subr.bf16.mxu0 0
  %489 = vmatpush2.bf16.msra.mxu0 0
  %490 = vmatprep.subr.bf16.mxu0 0
  %491 = vmatpush2.bf16.msra.mxu0 0
  %492 = vmatprep.subr.bf16.mxu0 0
  %493 = vmatpush2.bf16.msra.mxu0 %v452
  %494 = vmatprep.subr.bf16.mxu0 0
  %495 = vmatpush2.bf16.msra.mxu0 %v451
  %496 = vmatprep.subr.bf16.mxu0 0
  %497 = vmatpush2.bf16.msra.mxu0 %v450
  %498 = vmatprep.subr.bf16.mxu0 0
  %499 = vmatpush2.bf16.msra.mxu0 %v449
  %500 = vmatprep.mubr.bf16.mxu0 %v466
  %501 = vmatmul.mubr.bf16.gmra.mxu0 %v360
  %v502 = vpop.f32.mrf.mxu0
  %v503 = vadd.f32 %v391, %v502
  %v504 = vpop.f32.mrf.mxu0
  %v505 = vpop.f32.mrf.mxu0
  %v506 = vadd.f32 %v391, %v505
  %v507 = vpop.f32.mrf.mxu0
  %508 = vdwg.mxu0
  %v509 = vmax.f32 %v503, 0.0
  %v510 = vmax.f32 %v506, 0.0
  %v511 = vpack.c.bf16 %v509, %v509
  %v512 = vld [vmem:[%s7] sm:$0xf]
  %v513 = vld [vmem:[%s7 + $0x4] sm:$0xf]
  %v514 = vld [vmem:[%s7 + $0x8] sm:$0xf]
  %v515 = vld [vmem:[%s7 + $0xc] sm:$0xf]
  %v516 = vld [vmem:[%s7 + $0x10] sm:$0xf]
  %v517 = vld [vmem:[%s7 + $0x14] sm:$0xf]
  %v518 = vld [vmem:[%s7 + $0x18] sm:$0xf]
  %v519 = vld [vmem:[%s7 + $0x1c] sm:$0xf]
  %v520 = vld [vmem:[%s7 + $0x20] sm:$0xf]
  %v521 = vld [vmem:[%s7 + $0x24] sm:$0xf]
  %v522 = vld [vmem:[%s7 + $0x28] sm:$0xf]
  %v523 = vld [vmem:[%s7 + $0x2c] sm:$0xf]
  %v524 = vld [vmem:[%s7 + $0x30] sm:$0xf]
  %v525 = vld [vmem:[%s7 + $0x34] sm:$0xf]
  %v526 = vld [vmem:[%s7 + $0x38] sm:$0xf]
  %v527 = vld [vmem:[%s7 + $0x3c] sm:$0xf]
  %v528 = vpack.c.bf16 %v510, %v510
  %s529 = scalar_lea.vmem %s7, 64
  %v530 = vld [vmem:[%s529] sm:$0xf]
  %v531 = vld [vmem:[%s529 + $0x4] sm:$0xf]
  %v532 = vld [vmem:[%s529 + $0x8] sm:$0xf]
  %v533 = vld [vmem:[%s529 + $0xc] sm:$0xf]
  %v534 = vld [vmem:[%s529 + $0x10] sm:$0xf]
  %v535 = vld [vmem:[%s529 + $0x14] sm:$0xf]
  %v536 = vld [vmem:[%s529 + $0x18] sm:$0xf]
  %v537 = vld [vmem:[%s529 + $0x1c] sm:$0xf]
  %v538 = vld [vmem:[%s529 + $0x20] sm:$0xf]
  %v539 = vld [vmem:[%s529 + $0x24] sm:$0xf]
  %v540 = vld [vmem:[%s529 + $0x28] sm:$0xf]
  %v541 = vld [vmem:[%s529 + $0x2c] sm:$0xf]
  %v542 = vld [vmem:[%s529 + $0x30] sm:$0xf]
  %v543 = vld [vmem:[%s529 + $0x34] sm:$0xf]
  %v544 = vld [vmem:[%s529 + $0x38] sm:$0xf]
  %v545 = vld [vmem:[%s529 + $0x3c] sm:$0xf]
  %v562 = vunpack.c.l.b16 %v530
  %v563 = vunpack.c.l.b16 %v531
  %v564 = vunpack.c.l.b16 %v532
  %v565 = vunpack.c.l.b16 %v533
  %v566 = vunpack.c.l.b16 %v534
  %v567 = vunpack.c.l.b16 %v535
  %v568 = vunpack.c.l.b16 %v536
  %v569 = vunpack.c.l.b16 %v537
  %v570 = vunpack.c.l.b16 %v538
  %v571 = vunpack.c.l.b16 %v539
  %v572 = vunpack.c.l.b16 %v540
  %v573 = vunpack.c.l.b16 %v541
  %v574 = vunpack.c.l.b16 %v542
  %v575 = vunpack.c.l.b16 %v543
  %v576 = vunpack.c.l.b16 %v544
  %v577 = vunpack.c.l.b16 %v545
  %v578 = vpack.c.b16 %v563, %v562
  %v579 = vpack.c.b16 %v565, %v564
  %v580 = vpack.c.b16 %v567, %v566
  %v581 = vpack.c.b16 %v569, %v568
  %v582 = vpack.c.b16 %v571, %v570
  %v583 = vpack.c.b16 %v573, %v572
  %v584 = vpack.c.b16 %v575, %v574
  %v585 = vpack.c.b16 %v577, %v576
  %594 = vmatprep.subr.bf16.mxu0 0
  %595 = vmatpush1.bf16.msra.mxu0 %v585
  %596 = vmatprep.subr.bf16.mxu0 0
  %597 = vmatpush1.bf16.msra.mxu0 %v584
  %598 = vmatprep.subr.bf16.mxu0 0
  %599 = vmatpush1.bf16.msra.mxu0 %v583
  %600 = vmatprep.subr.bf16.mxu0 0
  %601 = vmatpush1.bf16.msra.mxu0 %v582
  %602 = vmatprep.subr.bf16.mxu0 0
  %603 = vmatpush1.bf16.msra.mxu0 %v581
  %604 = vmatprep.subr.bf16.mxu0 0
  %605 = vmatpush1.bf16.msra.mxu0 %v580
  %606 = vmatprep.subr.bf16.mxu0 0
  %607 = vmatpush1.bf16.msra.mxu0 %v579
  %608 = vmatprep.subr.bf16.mxu0 0
  %609 = vmatpush1.bf16.msra.mxu0 %v578
  %610 = vmatprep.subr.bf16.mxu0 0
  %611 = vmatpush2.bf16.msra.mxu0 0
  %612 = vmatprep.subr.bf16.mxu0 0
  %613 = vmatpush2.bf16.msra.mxu0 0
  %614 = vmatprep.subr.bf16.mxu0 0
  %615 = vmatpush2.bf16.msra.mxu0 0
  %616 = vmatprep.subr.bf16.mxu0 0
  %617 = vmatpush2.bf16.msra.mxu0 0
  %618 = vmatprep.subr.bf16.mxu0 0
  %619 = vmatpush2.bf16.msra.mxu0 0
  %620 = vmatprep.subr.bf16.mxu0 0
  %621 = vmatpush2.bf16.msra.mxu0 0
  %622 = vmatprep.subr.bf16.mxu0 0
  %623 = vmatpush2.bf16.msra.mxu0 0
  %624 = vmatprep.subr.bf16.mxu0 0
  %625 = vmatpush2.bf16.msra.mxu0 0
  %626 = vmatprep.mubr.bf16.mxu0 0
  %627 = vmatmul.mubr.bf16.gmra.mxu0 %v528
  %v628 = vpop.f32.mrf.mxu0
  %v629 = vadd.f32 0.0, %v628
  %v630 = vpop.f32.mrf.mxu0
  %v631 = vpop.f32.mrf.mxu0
  %v632 = vpop.f32.mrf.mxu0
  %633 = vdwg.mxu0
  %v650 = vunpack.c.l.b16 %v512
  %v651 = vunpack.c.l.b16 %v513
  %v652 = vunpack.c.l.b16 %v514
  %v653 = vunpack.c.l.b16 %v515
  %v654 = vunpack.c.l.b16 %v516
  %v655 = vunpack.c.l.b16 %v517
  %v656 = vunpack.c.l.b16 %v518
  %v657 = vunpack.c.l.b16 %v519
  %v658 = vunpack.c.l.b16 %v520
  %v659 = vunpack.c.l.b16 %v521
  %v660 = vunpack.c.l.b16 %v522
  %v661 = vunpack.c.l.b16 %v523
  %v662 = vunpack.c.l.b16 %v524
  %v663 = vunpack.c.l.b16 %v525
  %v664 = vunpack.c.l.b16 %v526
  %v665 = vunpack.c.l.b16 %v527
  %v666 = vpack.c.b16 %v651, %v650
  %v667 = vpack.c.b16 %v653, %v652
  %v668 = vpack.c.b16 %v655, %v654
  %v669 = vpack.c.b16 %v657, %v656
  %v670 = vpack.c.b16 %v659, %v658
  %v671 = vpack.c.b16 %v661, %v660
  %v672 = vpack.c.b16 %v663, %v662
  %v673 = vpack.c.b16 %v665, %v664
  %682 = vmatprep.subr.bf16.mxu0 0
  %683 = vmatpush1.bf16.msra.mxu0 %v673
  %684 = vmatprep.subr.bf16.mxu0 0
  %685 = vmatpush1.bf16.msra.mxu0 %v672
  %686 = vmatprep.subr.bf16.mxu0 0
  %687 = vmatpush1.bf16.msra.mxu0 %v671
  %688 = vmatprep.subr.bf16.mxu0 0
  %689 = vmatpush1.bf16.msra.mxu0 %v670
  %690 = vmatprep.subr.bf16.mxu0 0
  %691 = vmatpush1.bf16.msra.mxu0 %v669
  %692 = vmatprep.subr.bf16.mxu0 0
  %693 = vmatpush1.bf16.msra.mxu0 %v668
  %694 = vmatprep.subr.bf16.mxu0 0
  %695 = vmatpush1.bf16.msra.mxu0 %v667
  %696 = vmatprep.subr.bf16.mxu0 0
  %697 = vmatpush1.bf16.msra.mxu0 %v666
  %698 = vmatprep.subr.bf16.mxu0 0
  %699 = vmatpush2.bf16.msra.mxu0 0
  %700 = vmatprep.subr.bf16.mxu0 0
  %701 = vmatpush2.bf16.msra.mxu0 0
  %702 = vmatprep.subr.bf16.mxu0 0
  %703 = vmatpush2.bf16.msra.mxu0 0
  %704 = vmatprep.subr.bf16.mxu0 0
  %705 = vmatpush2.bf16.msra.mxu0 0
  %706 = vmatprep.subr.bf16.mxu0 0
  %707 = vmatpush2.bf16.msra.mxu0 0
  %708 = vmatprep.subr.bf16.mxu0 0
  %709 = vmatpush2.bf16.msra.mxu0 0
  %710 = vmatprep.subr.bf16.mxu0 0
  %711 = vmatpush2.bf16.msra.mxu0 0
  %712 = vmatprep.subr.bf16.mxu0 0
  %713 = vmatpush2.bf16.msra.mxu0 0
  %714 = vmatprep.mubr.bf16.mxu0 0
  %715 = vmatmul.mubr.bf16.gmra.mxu0 %v511
  %v716 = vpop.f32.mrf.mxu0
  %v717 = vadd.f32 %v629, %v716
  %v718 = vpop.f32.mrf.mxu0
  %v719 = vpop.f32.mrf.mxu0
  %v720 = vpop.f32.mrf.mxu0
  %721 = vdwg.mxu0
  %v722 = vld [vmem:[%s8] sm:$0x1]
  %v724 = vlaneseq
  %v725 = vshrl.u32 %v724, 7
  %v726 = vsub.s32 0, %v725
  %v727 = vrot.slane %v722, %v726
  %v729 = vadd.f32 %v717, %v727
  %vm730 = vcmask 162816
  %731 = vst.msk [vmem:[%s18] sm:$0xff] %vm730, %v729
  %v732 = vmul.f32 %v729, 0.5
  %v733 = vmul.f32 %v732, 1.442695
  %v734 = vpow.pop %v733
  %736 = vrot.lane.b32.xlu0 %v734, 118
  %v737 = vpop.permute.xlu0 %736
  %v739 = vmul.f32 %v74, %v737
  %v740 = vadd.f32 %v729, %v739
  %v741 = vpack.c.bf16 %v740, %v740
  %v742 = vld [vmem:[%s9] sm:$0xf]
  %v743 = vld [vmem:[%s9 + $0x4] sm:$0x1]
  %v746 = vunpack.c.l.b16 %v742
  %v747 = vunpack.c.l.b16 %v743
  %v748 = vpack.c.b16 %v747, %v746
  %v750 = vsel %vm93, %v741, 0
  %v753 = vsel %vm106, %v748, 0
  %755 = vmatprep.subr.bf16.mxu0 0
  %756 = vmatpush1.bf16.msra.mxu0 0
  %757 = vmatprep.subr.bf16.mxu0 0
  %758 = vmatpush1.bf16.msra.mxu0 0
  %759 = vmatprep.subr.bf16.mxu0 0
  %760 = vmatpush1.bf16.msra.mxu0 0
  %761 = vmatprep.subr.bf16.mxu0 0
  %762 = vmatpush1.bf16.msra.mxu0 0
  %763 = vmatprep.subr.bf16.mxu0 0
  %764 = vmatpush1.bf16.msra.mxu0 0
  %765 = vmatprep.subr.bf16.mxu0 0
  %766 = vmatpush1.bf16.msra.mxu0 0
  %767 = vmatprep.subr.bf16.mxu0 0
  %768 = vmatpush1.bf16.msra.mxu0 0
  %769 = vmatprep.subr.bf16.mxu0 0
  %770 = vmatpush1.bf16.msra.mxu0 %v753
  %771 = vmatprep.subr.bf16.mxu0 0
  %772 = vmatpush2.bf16.msra.mxu0 0
  %773 = vmatprep.subr.bf16.mxu0 0
  %774 = vmatpush2.bf16.msra.mxu0 0
  %775 = vmatprep.subr.bf16.mxu0 0
  %776 = vmatpush2.bf16.msra.mxu0 0
  %777 = vmatprep.subr.bf16.mxu0 0
  %778 = vmatpush2.bf16.msra.mxu0 0
  %779 = vmatprep.subr.bf16.mxu0 0
  %780 = vmatpush2.bf16.msra.mxu0 0
  %781 = vmatprep.subr.bf16.mxu0 0
  %782 = vmatpush2.bf16.msra.mxu0 0
  %783 = vmatprep.subr.bf16.mxu0 0
  %784 = vmatpush2.bf16.msra.mxu0 0
  %785 = vmatprep.subr.bf16.mxu0 0
  %786 = vmatpush2.bf16.msra.mxu0 0
  %787 = vmatprep.mubr.bf16.mxu0 0
  %788 = vmatmul.mubr.bf16.gmra.mxu0 %v750
  %v789 = vpop.f32.mrf.mxu0
  %v790 = vadd.f32 0.0, %v789
  %v791 = vpop.f32.mrf.mxu0
  %v792 = vpop.f32.mrf.mxu0
  %v793 = vpop.f32.mrf.mxu0
  %794 = vdwg.mxu0
  %s795 = scalar_lea.vmem %s9, 8
  %v796 = vld [vmem:[%s795] sm:$0xf]
  %v797 = vld [vmem:[%s795 + $0x4] sm:$0x1]
  %v800 = vunpack.c.l.b16 %v796
  %v801 = vunpack.c.l.b16 %v797
  %v802 = vpack.c.b16 %v801, %v800
  %v804 = vsel %vm106, %v802, 0
  %806 = vmatprep.subr.bf16.mxu0 0
  %807 = vmatpush1.bf16.msra.mxu0 0
  %808 = vmatprep.subr.bf16.mxu0 0
  %809 = vmatpush1.bf16.msra.mxu0 0
  %810 = vmatprep.subr.bf16.mxu0 0
  %811 = vmatpush1.bf16.msra.mxu0 0
  %812 = vmatprep.subr.bf16.mxu0 0
  %813 = vmatpush1.bf16.msra.mxu0 0
  %814 = vmatprep.subr.bf16.mxu0 0
  %815 = vmatpush1.bf16.msra.mxu0 0
  %816 = vmatprep.subr.bf16.mxu0 0
  %817 = vmatpush1.bf16.msra.mxu0 0
  %818 = vmatprep.subr.bf16.mxu0 0
  %819 = vmatpush1.bf16.msra.mxu0 0
  %820 = vmatprep.subr.bf16.mxu0 0
  %821 = vmatpush1.bf16.msra.mxu0 %v804
  %822 = vmatprep.subr.bf16.mxu0 0
  %823 = vmatpush2.bf16.msra.mxu0 0
  %824 = vmatprep.subr.bf16.mxu0 0
  %825 = vmatpush2.bf16.msra.mxu0 0
  %826 = vmatprep.subr.bf16.mxu0 0
  %827 = vmatpush2.bf16.msra.mxu0 0
  %828 = vmatprep.subr.bf16.mxu0 0
  %829 = vmatpush2.bf16.msra.mxu0 0
  %830 = vmatprep.subr.bf16.mxu0 0
  %831 = vmatpush2.bf16.msra.mxu0 0
  %832 = vmatprep.subr.bf16.mxu0 0
  %833 = vmatpush2.bf16.msra.mxu0 0
  %834 = vmatprep.subr.bf16.mxu0 0
  %835 = vmatpush2.bf16.msra.mxu0 0
  %836 = vmatprep.subr.bf16.mxu0 0
  %837 = vmatpush2.bf16.msra.mxu0 0
  %838 = vmatprep.mubr.bf16.mxu0 0
  %839 = vmatmul.mubr.bf16.gmra.mxu0 %v750
  %v840 = vpop.f32.mrf.mxu0
  %v841 = vadd.f32 0.0, %v840
  %v842 = vpop.f32.mrf.mxu0
  %v843 = vpop.f32.mrf.mxu0
  %v844 = vpop.f32.mrf.mxu0
  %845 = vdwg.mxu0
  %v846 = vld [vmem:[%s10] sm:$0xff]
  %v847 = vld [vmem:[%s10 + $0x8] sm:$0xff]
  %v848 = vadd.f32 %v790, %v846
  %v849 = vadd.f32 %v841, %v847
  %v850 = vmax.f32 %v848, 0.0
  %v851 = vmax.f32 %v849, 0.0
  %v852 = vsel %vm64, 1, 0
  %v853 = vsel %vm65, 1, 0
  %vm854 = vcmp.eq.s32.totalorder %v852, 1
  %vm855 = vcmp.eq.s32.totalorder %v853, 1
  %v856 = vsel %vm854, %v851, 0.0
  %v857 = vsel %vm855, %v850, 0.0
  %v858 = vpack.c.bf16 %v851, %v850
  %v859 = vpack.c.bf16 %v857, %v856
  %v860 = vld [vmem:[%s11] sm:$0xf]
  %v861 = vld [vmem:[%s11 + $0x4] sm:$0xf]
  %v862 = vld [vmem:[%s11 + $0x8] sm:$0xf]
  %v863 = vld [vmem:[%s11 + $0xc] sm:$0xf]
  %v864 = vld [vmem:[%s11 + $0x10] sm:$0xf]
  %v865 = vld [vmem:[%s11 + $0x14] sm:$0xf]
  %v866 = vld [vmem:[%s11 + $0x18] sm:$0xf]
  %v867 = vld [vmem:[%s11 + $0x1c] sm:$0xf]
  %v868 = vld [vmem:[%s11 + $0x20] sm:$0xf]
  %v869 = vld [vmem:[%s11 + $0x24] sm:$0xf]
  %v870 = vld [vmem:[%s11 + $0x28] sm:$0xf]
  %v871 = vld [vmem:[%s11 + $0x2c] sm:$0xf]
  %v872 = vld [vmem:[%s11 + $0x30] sm:$0xf]
  %v873 = vld [vmem:[%s11 + $0x34] sm:$0xf]
  %v874 = vld [vmem:[%s11 + $0x38] sm:$0xf]
  %v875 = vld [vmem:[%s11 + $0x3c] sm:$0xf]
  %v876 = vld [vmem:[%s11 + $0x40] sm:$0xf]
  %v877 = vld [vmem:[%s11 + $0x44] sm:$0xf]
  %v878 = vld [vmem:[%s11 + $0x48] sm:$0xf]
  %v879 = vld [vmem:[%s11 + $0x4c] sm:$0xf]
  %v880 = vld [vmem:[%s11 + $0x50] sm:$0xf]
  %v881 = vld [vmem:[%s11 + $0x54] sm:$0xf]
  %v882 = vld [vmem:[%s11 + $0x58] sm:$0xf]
  %v883 = vld [vmem:[%s11 + $0x5c] sm:$0xf]
  %v884 = vld [vmem:[%s11 + $0x60] sm:$0xf]
  %v885 = vld [vmem:[%s11 + $0x64] sm:$0xf]
  %v886 = vld [vmem:[%s11 + $0x68] sm:$0xf]
  %v887 = vld [vmem:[%s11 + $0x6c] sm:$0xf]
  %v888 = vld [vmem:[%s11 + $0x70] sm:$0xf]
  %v889 = vld [vmem:[%s11 + $0x74] sm:$0xf]
  %v890 = vld [vmem:[%s11 + $0x78] sm:$0xf]
  %v891 = vld [vmem:[%s11 + $0x7c] sm:$0xf]
  %v892 = vld [vmem:[%s12] sm:$0x1]
  %v894 = vlaneseq
  %v895 = vshrl.u32 %v894, 7
  %v896 = vsub.s32 0, %v895
  %v897 = vrot.slane %v892, %v896
  %v931 = vunpack.c.l.b16 %v860
  %v932 = vunpack.c.l.b16 %v861
  %v933 = vunpack.c.l.b16 %v862
  %v934 = vunpack.c.l.b16 %v863
  %v935 = vunpack.c.l.b16 %v864
  %v936 = vunpack.c.l.b16 %v865
  %v937 = vunpack.c.l.b16 %v866
  %v938 = vunpack.c.l.b16 %v867
  %v939 = vunpack.c.l.b16 %v868
  %v940 = vunpack.c.l.b16 %v869
  %v941 = vunpack.c.l.b16 %v870
  %v942 = vunpack.c.l.b16 %v871
  %v943 = vunpack.c.l.b16 %v872
  %v944 = vunpack.c.l.b16 %v873
  %v945 = vunpack.c.l.b16 %v874
  %v946 = vunpack.c.l.b16 %v875
  %v947 = vunpack.c.l.b16 %v876
  %v948 = vunpack.c.l.b16 %v877
  %v949 = vunpack.c.l.b16 %v878
  %v950 = vunpack.c.l.b16 %v879
  %v951 = vunpack.c.l.b16 %v880
  %v952 = vunpack.c.l.b16 %v881
  %v953 = vunpack.c.l.b16 %v882
  %v954 = vunpack.c.l.b16 %v883
  %v955 = vunpack.c.l.b16 %v884
  %v956 = vunpack.c.l.b16 %v885
  %v957 = vunpack.c.l.b16 %v886
  %v958 = vunpack.c.l.b16 %v887
  %v959 = vunpack.c.l.b16 %v888
  %v960 = vunpack.c.l.b16 %v889
  %v961 = vunpack.c.l.b16 %v890
  %v962 = vunpack.c.l.b16 %v891
  %v963 = vpack.c.b16 %v932, %v931
  %v964 = vpack.c.b16 %v934, %v933
  %v965 = vpack.c.b16 %v936, %v935
  %v966 = vpack.c.b16 %v938, %v937
  %v967 = vpack.c.b16 %v940, %v939
  %v968 = vpack.c.b16 %v942, %v941
  %v969 = vpack.c.b16 %v944, %v943
  %v970 = vpack.c.b16 %v946, %v945
  %v971 = vpack.c.b16 %v948, %v947
  %v972 = vpack.c.b16 %v950, %v949
  %v973 = vpack.c.b16 %v952, %v951
  %v974 = vpack.c.b16 %v954, %v953
  %v975 = vpack.c.b16 %v956, %v955
  %v976 = vpack.c.b16 %v958, %v957
  %v977 = vpack.c.b16 %v960, %v959
  %v978 = vpack.c.b16 %v962, %v961
  %995 = vmatprep.subr.bf16.mxu0 0
  %996 = vmatpush1.bf16.msra.mxu0 %v970
  %997 = vmatprep.subr.bf16.mxu0 0
  %998 = vmatpush1.bf16.msra.mxu0 %v969
  %999 = vmatprep.subr.bf16.mxu0 0
  %1000 = vmatpush1.bf16.msra.mxu0 %v968
  %1001 = vmatprep.subr.bf16.mxu0 0
  %1002 = vmatpush1.bf16.msra.mxu0 %v967
  %1003 = vmatprep.subr.bf16.mxu0 0
  %1004 = vmatpush1.bf16.msra.mxu0 %v966
  %1005 = vmatprep.subr.bf16.mxu0 0
  %1006 = vmatpush1.bf16.msra.mxu0 %v965
  %1007 = vmatprep.subr.bf16.mxu0 0
  %1008 = vmatpush1.bf16.msra.mxu0 %v964
  %1009 = vmatprep.subr.bf16.mxu0 0
  %1010 = vmatpush1.bf16.msra.mxu0 %v963
  %1011 = vmatprep.subr.bf16.mxu0 0
  %1012 = vmatpush2.bf16.msra.mxu0 %v978
  %1013 = vmatprep.subr.bf16.mxu0 0
  %1014 = vmatpush2.bf16.msra.mxu0 %v977
  %1015 = vmatprep.subr.bf16.mxu0 0
  %1016 = vmatpush2.bf16.msra.mxu0 %v976
  %1017 = vmatprep.subr.bf16.mxu0 0
  %1018 = vmatpush2.bf16.msra.mxu0 %v975
  %1019 = vmatprep.subr.bf16.mxu0 0
  %1020 = vmatpush2.bf16.msra.mxu0 %v974
  %1021 = vmatprep.subr.bf16.mxu0 0
  %1022 = vmatpush2.bf16.msra.mxu0 %v973
  %1023 = vmatprep.subr.bf16.mxu0 0
  %1024 = vmatpush2.bf16.msra.mxu0 %v972
  %1025 = vmatprep.subr.bf16.mxu0 0
  %1026 = vmatpush2.bf16.msra.mxu0 %v971
  %1027 = vmatprep.mubr.bf16.mxu0 %v859
  %1028 = vmatmul.mubr.bf16.gmra.mxu0 %v858
  %v1029 = vpop.f32.mrf.mxu0
  %v1030 = vadd.f32 %v897, %v1029
  %v1031 = vpop.f32.mrf.mxu0
  %v1032 = vpop.f32.mrf.mxu0
  %v1033 = vadd.f32 %v897, %v1032
  %v1034 = vpop.f32.mrf.mxu0
  %1035 = vdwg.mxu0
  %v1036 = vmax.f32 %v1030, 0.0
  %v1037 = vmax.f32 %v1033, 0.0
  %v1038 = vsel %vm854, %v1037, 0.0
  %v1039 = vsel %vm855, %v1036, 0.0
  %v1040 = vpack.c.bf16 %v1037, %v1036
  %v1041 = vpack.c.bf16 %v1039, %v1038
  %v1042 = vld [vmem:[%s13] sm:$0xf]
  %v1043 = vld [vmem:[%s13 + $0x4] sm:$0xf]
  %v1044 = vld [vmem:[%s13 + $0x8] sm:$0xf]
  %v1045 = vld [vmem:[%s13 + $0xc] sm:$0xf]
  %v1046 = vld [vmem:[%s13 + $0x10] sm:$0xf]
  %v1047 = vld [vmem:[%s13 + $0x14] sm:$0xf]
  %v1048 = vld [vmem:[%s13 + $0x18] sm:$0xf]
  %v1049 = vld [vmem:[%s13 + $0x1c] sm:$0xf]
  %v1050 = vld [vmem:[%s13 + $0x20] sm:$0xf]
  %v1051 = vld [vmem:[%s13 + $0x24] sm:$0xf]
  %v1052 = vld [vmem:[%s13 + $0x28] sm:$0xf]
  %v1053 = vld [vmem:[%s13 + $0x2c] sm:$0xf]
  %v1054 = vld [vmem:[%s13 + $0x30] sm:$0xf]
  %v1055 = vld [vmem:[%s13 + $0x34] sm:$0xf]
  %v1056 = vld [vmem:[%s13 + $0x38] sm:$0xf]
  %v1057 = vld [vmem:[%s13 + $0x3c] sm:$0xf]
  %v1058 = vld [vmem:[%s13 + $0x40] sm:$0xf]
  %v1059 = vld [vmem:[%s13 + $0x44] sm:$0xf]
  %v1060 = vld [vmem:[%s13 + $0x48] sm:$0xf]
  %v1061 = vld [vmem:[%s13 + $0x4c] sm:$0xf]
  %v1062 = vld [vmem:[%s13 + $0x50] sm:$0xf]
  %v1063 = vld [vmem:[%s13 + $0x54] sm:$0xf]
  %v1064 = vld [vmem:[%s13 + $0x58] sm:$0xf]
  %v1065 = vld [vmem:[%s13 + $0x5c] sm:$0xf]
  %v1066 = vld [vmem:[%s14] sm:$0x1]
  %v1068 = vlaneseq
  %v1069 = vshrl.u32 %v1068, 7
  %v1070 = vsub.s32 0, %v1069
  %v1071 = vrot.slane %v1066, %v1070
  %v1097 = vunpack.c.l.b16 %v1042
  %v1098 = vunpack.c.l.b16 %v1043
  %v1099 = vunpack.c.l.b16 %v1044
  %v1100 = vunpack.c.l.b16 %v1045
  %v1101 = vunpack.c.l.b16 %v1046
  %v1102 = vunpack.c.l.b16 %v1047
  %v1103 = vunpack.c.l.b16 %v1048
  %v1104 = vunpack.c.l.b16 %v1049
  %v1105 = vunpack.c.l.b16 %v1050
  %v1106 = vunpack.c.l.b16 %v1051
  %v1107 = vunpack.c.l.b16 %v1052
  %v1108 = vunpack.c.l.b16 %v1053
  %v1109 = vunpack.c.l.b16 %v1054
  %v1110 = vunpack.c.l.b16 %v1055
  %v1111 = vunpack.c.l.b16 %v1056
  %v1112 = vunpack.c.l.b16 %v1057
  %v1113 = vunpack.c.l.b16 %v1058
  %v1114 = vunpack.c.l.b16 %v1059
  %v1115 = vunpack.c.l.b16 %v1060
  %v1116 = vunpack.c.l.b16 %v1061
  %v1117 = vunpack.c.l.b16 %v1062
  %v1118 = vunpack.c.l.b16 %v1063
  %v1119 = vunpack.c.l.b16 %v1064
  %v1120 = vunpack.c.l.b16 %v1065
  %v1121 = vpack.c.b16 %v1098, %v1097
  %v1122 = vpack.c.b16 %v1100, %v1099
  %v1123 = vpack.c.b16 %v1102, %v1101
  %v1124 = vpack.c.b16 %v1104, %v1103
  %v1125 = vpack.c.b16 %v1106, %v1105
  %v1126 = vpack.c.b16 %v1108, %v1107
  %v1127 = vpack.c.b16 %v1110, %v1109
  %v1128 = vpack.c.b16 %v1112, %v1111
  %v1129 = vpack.c.b16 %v1114, %v1113
  %v1130 = vpack.c.b16 %v1116, %v1115
  %v1131 = vpack.c.b16 %v1118, %v1117
  %v1132 = vpack.c.b16 %v1120, %v1119
  %v1146 = vsel %vm208, %v1041, 0
  %1148 = vmatprep.subr.bf16.mxu0 0
  %1149 = vmatpush1.bf16.msra.mxu0 %v1128
  %1150 = vmatprep.subr.bf16.mxu0 0
  %1151 = vmatpush1.bf16.msra.mxu0 %v1127
  %1152 = vmatprep.subr.bf16.mxu0 0
  %1153 = vmatpush1.bf16.msra.mxu0 %v1126
  %1154 = vmatprep.subr.bf16.mxu0 0
  %1155 = vmatpush1.bf16.msra.mxu0 %v1125
  %1156 = vmatprep.subr.bf16.mxu0 0
  %1157 = vmatpush1.bf16.msra.mxu0 %v1124
  %1158 = vmatprep.subr.bf16.mxu0 0
  %1159 = vmatpush1.bf16.msra.mxu0 %v1123
  %1160 = vmatprep.subr.bf16.mxu0 0
  %1161 = vmatpush1.bf16.msra.mxu0 %v1122
  %1162 = vmatprep.subr.bf16.mxu0 0
  %1163 = vmatpush1.bf16.msra.mxu0 %v1121
  %1164 = vmatprep.subr.bf16.mxu0 0
  %1165 = vmatpush2.bf16.msra.mxu0 0
  %1166 = vmatprep.subr.bf16.mxu0 0
  %1167 = vmatpush2.bf16.msra.mxu0 0
  %1168 = vmatprep.subr.bf16.mxu0 0
  %1169 = vmatpush2.bf16.msra.mxu0 0
  %1170 = vmatprep.subr.bf16.mxu0 0
  %1171 = vmatpush2.bf16.msra.mxu0 0
  %1172 = vmatprep.subr.bf16.mxu0 0
  %1173 = vmatpush2.bf16.msra.mxu0 %v1132
  %1174 = vmatprep.subr.bf16.mxu0 0
  %1175 = vmatpush2.bf16.msra.mxu0 %v1131
  %1176 = vmatprep.subr.bf16.mxu0 0
  %1177 = vmatpush2.bf16.msra.mxu0 %v1130
  %1178 = vmatprep.subr.bf16.mxu0 0
  %1179 = vmatpush2.bf16.msra.mxu0 %v1129
  %1180 = vmatprep.mubr.bf16.mxu0 %v1146
  %1181 = vmatmul.mubr.bf16.gmra.mxu0 %v1040
  %v1182 = vpop.f32.mrf.mxu0
  %v1183 = vadd.f32 %v1071, %v1182
  %v1184 = vpop.f32.mrf.mxu0
  %v1185 = vpop.f32.mrf.mxu0
  %v1186 = vadd.f32 %v1071, %v1185
  %v1187 = vpop.f32.mrf.mxu0
  %1188 = vdwg.mxu0
  %v1189 = vmax.f32 %v1183, 0.0
  %v1190 = vmax.f32 %v1186, 0.0
  %v1191 = vsel %vm854, %v1190, 0.0
  %v1192 = vsel %vm855, %v1189, 0.0
  %v1193 = vpack.c.bf16 %v1190, %v1189
  %v1194 = vpack.c.bf16 %v1192, %v1191
  %v1195 = vld [vmem:[%s15] sm:$0xf]
  %v1196 = vld [vmem:[%s15 + $0x4] sm:$0xf]
  %v1197 = vld [vmem:[%s15 + $0x8] sm:$0xf]
  %v1198 = vld [vmem:[%s15 + $0xc] sm:$0xf]
  %v1199 = vld [vmem:[%s15 + $0x10] sm:$0xf]
  %v1200 = vld [vmem:[%s15 + $0x14] sm:$0xf]
  %v1201 = vld [vmem:[%s15 + $0x18] sm:$0xf]
  %v1202 = vld [vmem:[%s15 + $0x1c] sm:$0xf]
  %v1203 = vld [vmem:[%s15 + $0x20] sm:$0xf]
  %v1204 = vld [vmem:[%s15 + $0x24] sm:$0xf]
  %v1205 = vld [vmem:[%s15 + $0x28] sm:$0xf]
  %v1206 = vld [vmem:[%s15 + $0x2c] sm:$0xf]
  %v1207 = vld [vmem:[%s15 + $0x30] sm:$0xf]
  %v1208 = vld [vmem:[%s15 + $0x34] sm:$0xf]
  %v1209 = vld [vmem:[%s15 + $0x38] sm:$0xf]
  %v1210 = vld [vmem:[%s15 + $0x3c] sm:$0xf]
  %v1211 = vld [vmem:[%s15 + $0x40] sm:$0xf]
  %v1212 = vld [vmem:[%s15 + $0x44] sm:$0xf]
  %v1213 = vld [vmem:[%s15 + $0x48] sm:$0xf]
  %v1214 = vld [vmem:[%s15 + $0x4c] sm:$0xf]
  %v1215 = vld [vmem:[%s16] sm:$0x1]
  %v1217 = vlaneseq
  %v1218 = vshrl.u32 %v1217, 7
  %v1219 = vsub.s32 0, %v1218
  %v1220 = vrot.slane %v1215, %v1219
  %v1242 = vunpack.c.l.b16 %v1195
  %v1243 = vunpack.c.l.b16 %v1196
  %v1244 = vunpack.c.l.b16 %v1197
  %v1245 = vunpack.c.l.b16 %v1198
  %v1246 = vunpack.c.l.b16 %v1199
  %v1247 = vunpack.c.l.b16 %v1200
  %v1248 = vunpack.c.l.b16 %v1201
  %v1249 = vunpack.c.l.b16 %v1202
  %v1250 = vunpack.c.l.b16 %v1203
  %v1251 = vunpack.c.l.b16 %v1204
  %v1252 = vunpack.c.l.b16 %v1205
  %v1253 = vunpack.c.l.b16 %v1206
  %v1254 = vunpack.c.l.b16 %v1207
  %v1255 = vunpack.c.l.b16 %v1208
  %v1256 = vunpack.c.l.b16 %v1209
  %v1257 = vunpack.c.l.b16 %v1210
  %v1258 = vunpack.c.l.b16 %v1211
  %v1259 = vunpack.c.l.b16 %v1212
  %v1260 = vunpack.c.l.b16 %v1213
  %v1261 = vunpack.c.l.b16 %v1214
  %v1262 = vpack.c.b16 %v1243, %v1242
  %v1263 = vpack.c.b16 %v1245, %v1244
  %v1264 = vpack.c.b16 %v1247, %v1246
  %v1265 = vpack.c.b16 %v1249, %v1248
  %v1266 = vpack.c.b16 %v1251, %v1250
  %v1267 = vpack.c.b16 %v1253, %v1252
  %v1268 = vpack.c.b16 %v1255, %v1254
  %v1269 = vpack.c.b16 %v1257, %v1256
  %v1270 = vpack.c.b16 %v1259, %v1258
  %v1271 = vpack.c.b16 %v1261, %v1260
  %v1283 = vsel %vm205, %v1194, 0
  %1285 = vmatprep.subr.bf16.mxu0 0
  %1286 = vmatpush1.bf16.msra.mxu0 %v1269
  %1287 = vmatprep.subr.bf16.mxu0 0
  %1288 = vmatpush1.bf16.msra.mxu0 %v1268
  %1289 = vmatprep.subr.bf16.mxu0 0
  %1290 = vmatpush1.bf16.msra.mxu0 %v1267
  %1291 = vmatprep.subr.bf16.mxu0 0
  %1292 = vmatpush1.bf16.msra.mxu0 %v1266
  %1293 = vmatprep.subr.bf16.mxu0 0
  %1294 = vmatpush1.bf16.msra.mxu0 %v1265
  %1295 = vmatprep.subr.bf16.mxu0 0
  %1296 = vmatpush1.bf16.msra.mxu0 %v1264
  %1297 = vmatprep.subr.bf16.mxu0 0
  %1298 = vmatpush1.bf16.msra.mxu0 %v1263
  %1299 = vmatprep.subr.bf16.mxu0 0
  %1300 = vmatpush1.bf16.msra.mxu0 %v1262
  %1301 = vmatprep.subr.bf16.mxu0 0
  %1302 = vmatpush2.bf16.msra.mxu0 0
  %1303 = vmatprep.subr.bf16.mxu0 0
  %1304 = vmatpush2.bf16.msra.mxu0 0
  %1305 = vmatprep.subr.bf16.mxu0 0
  %1306 = vmatpush2.bf16.msra.mxu0 0
  %1307 = vmatprep.subr.bf16.mxu0 0
  %1308 = vmatpush2.bf16.msra.mxu0 0
  %1309 = vmatprep.subr.bf16.mxu0 0
  %1310 = vmatpush2.bf16.msra.mxu0 0
  %1311 = vmatprep.subr.bf16.mxu0 0
  %1312 = vmatpush2.bf16.msra.mxu0 0
  %1313 = vmatprep.subr.bf16.mxu0 0
  %1314 = vmatpush2.bf16.msra.mxu0 %v1271
  %1315 = vmatprep.subr.bf16.mxu0 0
  %1316 = vmatpush2.bf16.msra.mxu0 %v1270
  %1317 = vmatprep.mubr.bf16.mxu0 %v1283
  %1318 = vmatmul.mubr.bf16.gmra.mxu0 %v1193
  %v1319 = vpop.f32.mrf.mxu0
  %v1320 = vadd.f32 %v1220, %v1319
  %v1321 = vpop.f32.mrf.mxu0
  %v1322 = vpop.f32.mrf.mxu0
  %v1323 = vadd.f32 %v1220, %v1322
  %v1324 = vpop.f32.mrf.mxu0
  %1325 = vdwg.mxu0
  %vm1326 = vcmask 64512
  %1327 = vst.msk [vmem:[%s17] sm:$0xff] %vm1326, %v1320
  %1328 = vst.msk [vmem:[%s17 + $0x8] sm:$0xff] %vm1326, %v1323
  // Predicated region
  $region70: #{_lambda_.1} parent=0 // pred_check
    _
  $region71: #{_lambda_.1} parent=0 // pred_check_branch
    %1330 = sbr.rel (0) target = $region73
  $region72: #{_lambda_.1} parent=0 // pred_region
    _
  $region73: #{_lambda_.1} parent=0 // pred_fallthru
    _
  // Predicated region
  $region74: #{_lambda_.1} parent=0 // pred_check
    _
  $region75: #{_lambda_.1} parent=0 // pred_check_branch
    %1332 = sbr.rel (0) target = $region77
  $region76: #{_lambda_.1} parent=0 // pred_region
    _
  $region77: #{_lambda_.1} parent=0 // pred_fallthru
    _
  // Predicated region
  $region78: #{_lambda_.1} parent=0 // pred_check
    _
  $region79: #{_lambda_.1} parent=0 // pred_check_branch
    %1334 = sbr.rel (0) target = $region81
  $region80: #{_lambda_.1} parent=0 // pred_region
    _
  $region81: #{_lambda_.1} parent=0 // pred_fallthru
    _
  // Predicated region
  $region82: #{_lambda_.1} parent=0 // pred_check
    _
  $region83: #{_lambda_.1} parent=0 // pred_check_branch
    %1336 = sbr.rel (0) target = $region85
  $region84: #{_lambda_.1} parent=0 // pred_region
    _
  $region85: #{_lambda_.1} parent=0 // pred_fallthru
    _

</llo_original>
